<compile_context>
chip_gen: v6e
topology: v6e:2x2x1
jax: 0.10.0
libtpu: 0.0.40
codegen_flags: <defaults>
</compile_context>

<pallas_src>
import functools

import jax
import jax.numpy as jnp
from jax.experimental import pallas as pl
from jax.experimental.pallas import tpu as pltpu

# ---- constants (stand-ins for rubiks_rl.constants) ----
MAX_SEQUENCE_LENGTH = 64
PADDING_IDX = 0  # TODO(synk): real value of constants.PADDING_IDX unknown; only affects init (row zeroed)

LN_EPS = 1e-5
_INV_SQRT2 = 0.7071067811865476
_NEG_BIG = -1e30
NUM_CLASSES = 13
HEAD_PAD = 128          # lane-dense padded width for the 13-class softmax head


def _gelu_exact(x):
    # nn.GELU() default (approximate='none'): 0.5*x*(1+erf(x/sqrt(2)))
    # (tanh approximation would move this to the EUP slot but changes numerics)
    return 0.5 * x * (1.0 + jax.lax.erf(x * _INV_SQRT2))


def _round_up(x, m):
    return ((x + m - 1) // m) * m


def _padded_dims(d_model, num_heads):
    # padded model dim: multiple of 128 lanes AND of num_heads (per-head padding)
    d_pad = _round_up(d_model, 128)
    while d_pad % num_heads != 0:
        d_pad += 128
    hd_pad = d_pad // num_heads
    hidden_pad = _round_up(4 * d_model, 128)
    return d_pad, hd_pad, hidden_pad


# --------------------------------------------------------------------------
# Fused kernel: grid = (num_bt_tiles, num_blocks).
# Each (bt, l) step applies transformer block l to this BT tile's resident
# activation; the last block also applies the 13-class softmax head.
# --------------------------------------------------------------------------
def _fused_kernel(num_heads, head_dim, hd_pad, d_real, b_tile, T, h_chunk,
                  x0_hbm, mask_ref,
                  ln1_g_ref, ln1_b_ref,
                  wqkv_ref, bqkv_ref, wo_ref, bo_ref,
                  w1_ref, b1_ref, w2_ref, b2_ref,
                  hw_ref, hb_ref,
                  o_ref,
                  x_scr, dma_sem):
    bt = pl.program_id(0)
    l = pl.program_id(1)
    H = num_heads
    Dp = H * hd_pad
    tbt = b_tile * T

    # ---- first block: DMA this tile's embeddings from HBM into the scratch ----
    @pl.when(l == 0)
    def _():
        row0 = pl.multiple_of(bt * tbt, tbt)
        cp = pltpu.make_async_copy(x0_hbm.at[pl.ds(row0, tbt), :], x_scr, dma_sem)
        cp.start()
        cp.wait()

    x = x_scr[...]                                    # (tbt, Dp) f32; cols >= d_real are 0

    # ---- LayerNorm 1: single pass, statistics over the real feature dim ----
    inv_d = 1.0 / float(d_real)
    mu = jnp.sum(x, axis=-1, keepdims=True) * inv_d
    ex2 = jnp.sum(x * x, axis=-1, keepdims=True) * inv_d
    var = ex2 - mu * mu
    z = (x - mu) * jax.lax.rsqrt(var + LN_EPS)
    z = z * ln1_g_ref[...] + ln1_b_ref[...]           # padded gamma/beta are 0
    zb = z.astype(jnp.bfloat16)

    # ---- fused QKV: one (tbt, Dp) x (Dp, 3Dp) matmul; 128-aligned q/k/v slices ----
    qkv = jnp.dot(zb, wqkv_ref[...], preferred_element_type=jnp.float32) + bqkv_ref[...]

    def split_heads(a):                               # (tbt, Dp) -> (H*b_tile, T, hd_pad)
        a3 = jnp.transpose(a.reshape(tbt, H, hd_pad), (1, 0, 2))   # lane dim intact
        return a3.reshape(H * b_tile, T, hd_pad).astype(jnp.bfloat16)

    qh = split_heads(qkv[:, :Dp])
    kh = split_heads(qkv[:, Dp:2 * Dp])
    vh = split_heads(qkv[:, 2 * Dp:])

    # ---- attention: all heads in one pair of batched einsums ----
    scale = 1.0 / (float(head_dim) ** 0.5)            # real head_dim (padding dims are zero)
    sc = jnp.einsum('nqd,nkd->nqk', qh, kh,
                    preferred_element_type=jnp.float32) * scale
    sc = sc + mask_ref[...][None, :, :]               # additive float mask, broadcast once
    sc = sc - jnp.max(sc, axis=-1, keepdims=True)
    e = jnp.exp(sc)
    p = e / jnp.sum(e, axis=-1, keepdims=True)        # exact divide (torch softmax parity)
    ctx = jnp.einsum('nqk,nkd->nqd', p.astype(jnp.bfloat16), vh,
                     preferred_element_type=jnp.float32)

    # merge heads back to (tbt, Dp) and apply ONE full-width output projection
    ctx = jnp.transpose(ctx.reshape(H, tbt, hd_pad), (1, 0, 2)).reshape(tbt, Dp)
    attn = jnp.dot(ctx.astype(jnp.bfloat16), wo_ref[...],
                   preferred_element_type=jnp.float32) + bo_ref[...]
    x = x + attn

    # ---- MLP (no pre-LN: Block.forward never applies ln2) ----
    xb = x.astype(jnp.bfloat16)
    hidden = w1_ref.shape[1]
    h2 = jnp.zeros_like(x)
    for c0 in range(0, hidden, h_chunk):              # static chunking of the 4*D hidden dim
        c1 = min(c0 + h_chunk, hidden)
        h1 = jnp.dot(xb, w1_ref[:, c0:c1],
                     preferred_element_type=jnp.float32) + b1_ref[:, c0:c1]
        h1 = _gelu_exact(h1)
        h2 = h2 + jnp.dot(h1.astype(jnp.bfloat16), w2_ref[c0:c1, :],
                          preferred_element_type=jnp.float32)
    x = x + h2 + b2_ref[...]

    x_scr[...] = x

    # ---- last block: fused Linear(d_model, 13) + Softmax into a 128-lane slab.
    #      Padded logit columns carry a -1e30 bias, so exp() underflows to 0 and
    #      the softmax over 128 lanes equals the softmax over the 13 real classes.
    @pl.when(l == pl.num_programs(1) - 1)
    def _():
        logits = jnp.dot(x.astype(jnp.bfloat16), hw_ref[...],
                         preferred_element_type=jnp.float32) + hb_ref[...]
        logits = logits - jnp.max(logits, axis=-1, keepdims=True)
        ee = jnp.exp(logits)
        o_ref[...] = ee / jnp.sum(ee, axis=-1, keepdims=True)


# --------------------------------------------------------------------------
# Parameters: torch-layout weights, pre-transposed to (in, out), zero-padded to
# lane-dense dims (per-head padding inside QKV / out-proj), matmul weights bf16.
# --------------------------------------------------------------------------
def init_params(key, num_blocks, d_model, num_heads):
    assert d_model % num_heads == 0
    hd = d_model // num_heads
    Dp, hdp, Hdp = _padded_dims(d_model, num_heads)
    scale = 0.02
    ks = jax.random.split(key, 4 + num_blocks * 6)

    def pad_in_out(w_t, in_pad, out_pad):             # w_t: (in_real, out_real)
        out = jnp.zeros((in_pad, out_pad), jnp.float32)
        return out.at[:w_t.shape[0], :w_t.shape[1]].set(w_t)

    def head_scatter_cols(w_t):                       # (D, D) -> (Dp, Dp), head h real cols at h*hdp
        out = jnp.zeros((Dp, Dp), jnp.float32)
        for h in range(num_heads):
            out = out.at[:d_model, h * hdp:h * hdp + hd].set(w_t[:, h * hd:(h + 1) * hd])
        return out

    def head_scatter_rows(w_t):                       # (D, D) -> (Dp, Dp), head h real rows at h*hdp
        out = jnp.zeros((Dp, Dp), jnp.float32)
        for h in range(num_heads):
            out = out.at[h * hdp:h * hdp + hd, :d_model].set(w_t[h * hd:(h + 1) * hd, :])
        return out

    tok_emb = scale * jax.random.normal(ks[0], (20, d_model), jnp.float32)
    tok_emb = tok_emb.at[PADDING_IDX].set(0.0)        # padding_idx row is zero
    tok_emb = jnp.zeros((20, Dp), jnp.float32).at[:, :d_model].set(tok_emb)
    pos_emb = scale * jax.random.normal(ks[1], (MAX_SEQUENCE_LENGTH, d_model), jnp.float32)
    pos_emb = jnp.zeros((MAX_SEQUENCE_LENGTH, Dp), jnp.float32).at[:, :d_model].set(pos_emb)

    head_w = scale * jax.random.normal(ks[2], (NUM_CLASSES, d_model), jnp.float32)  # torch (out, in)
    head_b = scale * jax.random.normal(ks[3], (NUM_CLASSES,), jnp.float32)
    head_w_p = jnp.zeros((Dp, HEAD_PAD), jnp.float32).at[:d_model, :NUM_CLASSES].set(head_w.T)
    head_b_p = jnp.full((1, HEAD_PAD), _NEG_BIG, jnp.float32).at[0, :NUM_CLASSES].set(head_b)

    wqkv, wo, w1, w2, b1, b2 = [], [], [], [], [], []
    for i in range(num_blocks):
        k0, k1, k2, k3, k4, k5 = ks[4 + 6 * i: 4 + 6 * (i + 1)]
        in_proj_w = scale * jax.random.normal(k0, (3 * d_model, d_model), jnp.float32)    # torch (3D, D)
        out_proj_w = scale * jax.random.normal(k1, (d_model, d_model), jnp.float32)       # torch (D, D)
        fc_expand_w = scale * jax.random.normal(k2, (4 * d_model, d_model), jnp.float32)  # torch (4D, D)
        fc_compress_w = scale * jax.random.normal(k3, (d_model, 4 * d_model), jnp.float32)
        b1_i = scale * jax.random.normal(k4, (4 * d_model,), jnp.float32)
        b2_i = scale * jax.random.normal(k5, (d_model,), jnp.float32)

        wq_p = head_scatter_cols(in_proj_w[:d_model].T)
        wk_p = head_scatter_cols(in_proj_w[d_model:2 * d_model].T)
        wv_p = head_scatter_cols(in_proj_w[2 * d_model:].T)
        wqkv.append(jnp.concatenate([wq_p, wk_p, wv_p], axis=1))        # (Dp, 3Dp), fused
        wo.append(head_scatter_rows(out_proj_w.T))                      # (Dp, Dp)
        w1.append(pad_in_out(fc_expand_w.T, Dp, Hdp))                   # (Dp, Hdp)
        w2.append(pad_in_out(fc_compress_w.T, Hdp, Dp))                 # (Hdp, Dp)
        b1.append(jnp.zeros((1, Hdp), jnp.float32).at[0, :4 * d_model].set(b1_i))
        b2.append(jnp.zeros((1, Dp), jnp.float32).at[0, :d_model].set(b2_i))

    L = num_blocks
    ln1_g = jnp.zeros((L, 1, Dp), jnp.float32).at[:, :, :d_model].set(1.0)
    ln1_b = jnp.zeros((L, 1, Dp), jnp.float32)

    return {
        "d_model": d_model,
        "tok_emb": tok_emb,
        "pos_emb": pos_emb,
        "ln1_g": ln1_g,
        "ln1_b": ln1_b,
        "wqkv": jnp.stack(wqkv).astype(jnp.bfloat16),
        "bqkv": jnp.zeros((L, 1, 3 * Dp), jnp.float32),   # MultiheadAttention in_proj bias init = 0
        "wo": jnp.stack(wo).astype(jnp.bfloat16),
        "bo": jnp.zeros((L, 1, Dp), jnp.float32),         # out_proj bias init = 0
        "w1": jnp.stack(w1).astype(jnp.bfloat16),
        "b1": jnp.stack(b1),
        "w2": jnp.stack(w2).astype(jnp.bfloat16),
        "b2": jnp.stack(b2),
        "head_w": head_w_p.astype(jnp.bfloat16),          # (Dp, 128), cols 13.. are zero
        "head_b": head_b_p,                                # (1, 128), cols 13.. are -1e30
        # ln2 exists in the torch module but Block.forward never applies it -> omitted
    }


def _vmem_limit_bytes(Dp, Hdp, tbt, T, h_chunk, H, mlp_buffers):
    bf16, f32 = 2, 4
    w_main = (Dp * 3 * Dp + Dp * Dp) * bf16 + (3 * Dp + 3 * Dp) * f32
    w_mlp = (Dp * Hdp + Hdp * Dp) * bf16 + (Hdp + Dp) * f32
    streamed = 2 * w_main + max(2, mlp_buffers) * w_mlp
    resident = T * T * f32 + Dp * HEAD_PAD * bf16 + HEAD_PAD * f32
    out_buf = 2 * tbt * HEAD_PAD * f32
    scratch = tbt * Dp * f32
    # rough live intermediates: z, qkv, q/k/v head slabs, ctx, attn, h1 chunk, h2, scores
    live = tbt * (Dp + 3 * Dp + 3 * Dp + 2 * Dp + h_chunk + Dp) * f32 + 2 * H * tbt * T * f32
    need = streamed + resident + out_buf + scratch + live
    try:
        phys = pltpu.get_tpu_info().vmem_capacity_bytes   # per-generation physical VMEM
    except Exception:
        phys = 64 * 1024 * 1024                           # v7x per-TensorCore (smallest current)
    return int(min(int(phys * 0.9), max(32 * 1024 * 1024, int(need * 1.5))))


# --------------------------------------------------------------------------
# Full forward: embeddings (XLA gather glue) + one fused Pallas call
# --------------------------------------------------------------------------
def lm_rubik_forward(params, tokens, attn_mask, num_heads, *,
                     batch_tile=None, mlp_weight_buffers=2):
    B, T = tokens.shape
    D = int(params["d_model"])
    Dp = params["tok_emb"].shape[1]
    H = num_heads
    hd = D // H
    hdp = Dp // H
    Hdp = params["w1"].shape[2]
    L = params["wqkv"].shape[0]
    BT = B * T

    # ---- BT tile: whole batch rows per tile; prefer few tiles (weights re-streamed
    #      once per tile) with 8-row-aligned tiles and a modest resident activation ----
    if batch_tile is None:
        batch_tile = B
        best = None
        for bpt in range(1, B + 1):
            if B % bpt:
                continue
            rows = bpt * T
            if rows % 8 == 0 and rows * Dp * 4 <= 8 * 1024 * 1024:
                best = bpt
        if best is not None:
            batch_tile = best
    assert B % batch_tile == 0
    n_bt = B // batch_tile
    tbt = batch_tile * T

    # ---- embeddings (gather stays in XLA); padded cols beyond D are zero ----
    tok = jnp.take(params["tok_emb"], tokens, axis=0)           # (B, T, Dp)
    pos = params["pos_emb"][:T][None, :, :]
    x0 = (tok + pos).astype(jnp.float32).reshape(BT, Dp)

    if attn_mask.dtype == jnp.bool_:
        mask = jnp.where(attn_mask, -1e9, 0.0).astype(jnp.float32)  # torch bool mask: True = masked
    else:
        mask = attn_mask.astype(jnp.float32)

    h_chunk = min(Hdp, 1024)

    def stream(a, buffers=2):       # per-block weights, streamed along the block axis
        tail = a.shape[1:]
        zeros = (0,) * len(tail)
        kw = {}
        if buffers != 2:            # deeper buffering only when explicitly requested (e.g. v6e)
            kw["pipeline_mode"] = pl.Buffered(buffers)
        return pl.BlockSpec((None,) + tail, lambda bt, l, _z=zeros: (l,) + _z, **kw)

    def resident(a):                # same block every step -> stays resident in VMEM
        return pl.BlockSpec(a.shape, lambda bt, l, _n=a.ndim: (0,) * _n)

    per_block_args = (params["ln1_g"], params["ln1_b"],
                      params["wqkv"], params["bqkv"],
                      params["wo"], params["bo"],
                      params["w1"], params["b1"],
                      params["w2"], params["b2"])
    per_block_specs = [
        stream(params["ln1_g"]), stream(params["ln1_b"]),
        stream(params["wqkv"]), stream(params["bqkv"]),
        stream(params["wo"]), stream(params["bo"]),
        stream(params["w1"], mlp_weight_buffers), stream(params["b1"]),
        stream(params["w2"], mlp_weight_buffers), stream(params["b2"]),
    ]

    args = (x0, mask) + per_block_args + (params["head_w"], params["head_b"])
    in_specs = ([pl.BlockSpec(memory_space=pl.ANY),   # x0 stays in HBM; DMA'd once at l==0
                 resident(mask)]
                + per_block_specs
                + [resident(params["head_w"]), resident(params["head_b"])])

    vmem_limit = _vmem_limit_bytes(Dp, Hdp, tbt, T, h_chunk, H, mlp_weight_buffers)

    out = pl.pallas_call(
        functools.partial(_fused_kernel, H, hd, hdp, D, batch_tile, T, h_chunk),
        out_shape=jax.ShapeDtypeStruct((BT, HEAD_PAD), jnp.float32),
        grid=(n_bt, L),
        in_specs=in_specs,
        out_specs=pl.BlockSpec((tbt, HEAD_PAD), lambda bt, l: (bt, 0)),
        scratch_shapes=[pltpu.VMEM((tbt, Dp), jnp.float32),   # resident activation (per tile)
                        pltpu.SemaphoreType.DMA],
        compiler_params=pltpu.CompilerParams(
            dimension_semantics=("parallel", "arbitrary"),    # BT tiles parallel; blocks sequential
            vmem_limit_bytes=vmem_limit),
    )(*args)

    return out[:, :NUM_CLASSES].reshape(B, T, NUM_CLASSES)


if __name__ == "__main__":
    # small config consistent with the module (d_model divisible by num_heads);
    # d_model=64 is padded internally to 128 lanes (per-head padding 16 -> 32).
    num_blocks, d_model, num_heads = 2, 64, 4
    B, T = 2, 8

    key = jax.random.PRNGKey(0)
    k_par, k_tok = jax.random.split(key)
    params = init_params(k_par, num_blocks, d_model, num_heads)

    tokens = jax.random.randint(k_tok, (B, T), 0, 20, dtype=jnp.int32)
    # causal additive float mask, as typically passed to nn.MultiheadAttention
    causal = jnp.tril(jnp.ones((T, T), dtype=bool))
    attn_mask = jnp.where(causal, 0.0, -1e9).astype(jnp.float32)

    # batch_tile=1 exercises the parallel BT-tile grid axis (2 tiles of 8 rows)
    out = lm_rubik_forward(params, tokens, attn_mask, num_heads, batch_tile=1)
    out = jax.block_until_ready(out)

    assert out.shape == (B, T, NUM_CLASSES), out.shape
    # softmax rows should sum to ~1 (head softmax uses exact divide)
    assert bool(jnp.all(jnp.abs(jnp.sum(out, axis=-1) - 1.0) < 1e-4))
    print("KERNEL_OK")
</pallas_src>

<mosaic_0001>
module attributes {stable_mosaic.version = 11 : i64} {
  func.func @_fused_kernel(%arg0: i32, %arg1: i32, %arg2: memref<16x128xf32, #tpu.memory_space<any>>, %arg3: memref<8x8xf32, #tpu.memory_space<vmem>>, %arg4: memref<1x1x128xf32, #tpu.memory_space<vmem>>, %arg5: memref<1x1x128xf32, #tpu.memory_space<vmem>>, %arg6: memref<1x128x384xbf16, #tpu.memory_space<vmem>>, %arg7: memref<1x1x384xf32, #tpu.memory_space<vmem>>, %arg8: memref<1x128x128xbf16, #tpu.memory_space<vmem>>, %arg9: memref<1x1x128xf32, #tpu.memory_space<vmem>>, %arg10: memref<1x128x256xbf16, #tpu.memory_space<vmem>>, %arg11: memref<1x1x256xf32, #tpu.memory_space<vmem>>, %arg12: memref<1x256x128xbf16, #tpu.memory_space<vmem>>, %arg13: memref<1x1x128xf32, #tpu.memory_space<vmem>>, %arg14: memref<128x128xbf16, #tpu.memory_space<vmem>>, %arg15: memref<1x128xf32, #tpu.memory_space<vmem>>, %arg16: memref<8x128xf32, #tpu.memory_space<vmem>>, %arg17: memref<8x128xf32, #tpu.memory_space<vmem>>, %arg18: memref<!tpu.dma_semaphore, #tpu.memory_space<semaphore_mem>>) attributes {dimension_semantics = [#tpu.dimension_semantics<parallel>, #tpu.dimension_semantics<arbitrary>], iteration_bounds = array<i64: 2, 2>, scalar_prefetch = 0 : i64, scratch_operands = 2 : i64, tpu.core_type = #tpu.core_type<tc>, window_params = [{}, {pipeline_mode = #tpu.pipeline_mode<synchronous>, transform_indices = @transform_1, window_bounds = array<i64: 8, 8>}, {transform_indices = @transform_2, window_bounds = array<i64: 1, 1, 128>}, {transform_indices = @transform_3, window_bounds = array<i64: 1, 1, 128>}, {transform_indices = @transform_4, window_bounds = array<i64: 1, 128, 384>}, {transform_indices = @transform_5, window_bounds = array<i64: 1, 1, 384>}, {transform_indices = @transform_6, window_bounds = array<i64: 1, 128, 128>}, {transform_indices = @transform_7, window_bounds = array<i64: 1, 1, 128>}, {transform_indices = @transform_8, window_bounds = array<i64: 1, 128, 256>}, {transform_indices = @transform_9, window_bounds = array<i64: 1, 1, 256>}, {transform_indices = @transform_10, window_bounds = array<i64: 1, 256, 128>}, {transform_indices = @transform_11, window_bounds = array<i64: 1, 1, 128>}, {pipeline_mode = #tpu.pipeline_mode<synchronous>, transform_indices = @transform_12, window_bounds = array<i64: 128, 128>}, {pipeline_mode = #tpu.pipeline_mode<synchronous>, transform_indices = @transform_13, window_bounds = array<i64: 1, 128>}, {transform_indices = @transform_14, window_bounds = array<i64: 8, 128>}]} {
    %c0_i32 = arith.constant 0 : i32
    %0 = arith.cmpi eq, %arg1, %c0_i32 : i32
    %1 = arith.extui %0 : i1 to i32
    %c0_i32_0 = arith.constant 0 : i32
    %2 = arith.cmpi ne, %1, %c0_i32_0 : i32
    scf.if %2 {
      %c8_i32 = arith.constant 8 : i32
      %110 = arith.muli %arg0, %c8_i32 : i32
      %111 = tpu.assume_multiple %110, 8 : i32
      %c0_i32_54 = arith.constant 0 : i32
      %112 = tpu.memref_slice %arg2[%111, %c0_i32_54] : memref<16x128xf32, #tpu.memory_space<any>> -> memref<8x128xf32, #tpu.memory_space<any>>
      tpu.enqueue_dma source(%112 : memref<8x128xf32, #tpu.memory_space<any>>) target(%arg17 : memref<8x128xf32, #tpu.memory_space<vmem>>) target_semaphore(%arg18 : memref<!tpu.dma_semaphore, #tpu.memory_space<semaphore_mem>>)
      %c0_i32_55 = arith.constant 0 : i32
      %113 = tpu.memref_slice %arg2[%111, %c0_i32_55] : memref<16x128xf32, #tpu.memory_space<any>> -> memref<8x128xf32, #tpu.memory_space<any>>
      tpu.wait_dma2 semaphore(%arg18 : memref<!tpu.dma_semaphore, #tpu.memory_space<semaphore_mem>>) src(%113 : memref<8x128xf32, #tpu.memory_space<any>>) dst(%arg17 : memref<8x128xf32, #tpu.memory_space<vmem>>)
    } else {
    }
    %c0 = arith.constant 0 : index
    %c0_1 = arith.constant 0 : index
    %3 = vector.load %arg17[%c0, %c0_1] : memref<8x128xf32, #tpu.memory_space<vmem>>, vector<8x128xf32>
    %cst = arith.constant dense<0.000000e+00> : vector<8xf32>
    %4 = vector.multi_reduction <add>, %3, %cst [1] : vector<8x128xf32> to vector<8xf32>
    %5 = vector.shape_cast %4 : vector<8xf32> to vector<8x1xf32>
    %cst_2 = arith.constant 1.562500e-02 : f32
    %6 = vector.broadcast %cst_2 : f32 to vector<8x1xf32>
    %7 = arith.mulf %5, %6 : vector<8x1xf32>
    %8 = arith.mulf %3, %3 : vector<8x128xf32>
    %cst_3 = arith.constant dense<0.000000e+00> : vector<8xf32>
    %9 = vector.multi_reduction <add>, %8, %cst_3 [1] : vector<8x128xf32> to vector<8xf32>
    %10 = vector.shape_cast %9 : vector<8xf32> to vector<8x1xf32>
    %cst_4 = arith.constant 1.562500e-02 : f32
    %11 = vector.broadcast %cst_4 : f32 to vector<8x1xf32>
    %12 = arith.mulf %10, %11 : vector<8x1xf32>
    %13 = arith.mulf %7, %7 : vector<8x1xf32>
    %14 = arith.subf %12, %13 : vector<8x1xf32>
    %15 = vector.broadcast %7 : vector<8x1xf32> to vector<8x128xf32>
    %16 = arith.subf %3, %15 : vector<8x128xf32>
    %cst_5 = arith.constant 9.99999974E-6 : f32
    %17 = vector.broadcast %cst_5 : f32 to vector<8x1xf32>
    %18 = arith.addf %14, %17 : vector<8x1xf32>
    %19 = math.rsqrt %18 : vector<8x1xf32>
    %20 = vector.broadcast %19 : vector<8x1xf32> to vector<8x128xf32>
    %21 = arith.mulf %16, %20 : vector<8x128xf32>
    %c0_6 = arith.constant 0 : index
    %c0_7 = arith.constant 0 : index
    %c0_8 = arith.constant 0 : index
    %22 = vector.load %arg4[%c0_6, %c0_7, %c0_8] : memref<1x1x128xf32, #tpu.memory_space<vmem>>, vector<1x1x128xf32>
    %23 = vector.shape_cast %22 : vector<1x1x128xf32> to vector<1x128xf32>
    %24 = vector.broadcast %23 : vector<1x128xf32> to vector<8x128xf32>
    %25 = arith.mulf %21, %24 : vector<8x128xf32>
    %c0_9 = arith.constant 0 : index
    %c0_10 = arith.constant 0 : index
    %c0_11 = arith.constant 0 : index
    %26 = vector.load %arg5[%c0_9, %c0_10, %c0_11] : memref<1x1x128xf32, #tpu.memory_space<vmem>>, vector<1x1x128xf32>
    %27 = vector.shape_cast %26 : vector<1x1x128xf32> to vector<1x128xf32>
    %28 = vector.broadcast %27 : vector<1x128xf32> to vector<8x128xf32>
    %29 = arith.addf %25, %28 : vector<8x128xf32>
    %30 = arith.truncf %29 : vector<8x128xf32> to vector<8x128xbf16>
    %c0_12 = arith.constant 0 : index
    %c0_13 = arith.constant 0 : index
    %c0_14 = arith.constant 0 : index
    %31 = vector.load %arg6[%c0_12, %c0_13, %c0_14] : memref<1x128x384xbf16, #tpu.memory_space<vmem>>, vector<1x128x384xbf16>
    %32 = vector.shape_cast %31 : vector<1x128x384xbf16> to vector<128x384xbf16>
    %cst_15 = arith.constant dense<0.000000e+00> : vector<8x384xf32>
    %33 = tpu.matmul %30, %32, %cst_15 {dimension_numbers = #tpu.dot_dimension_numbers<[1], [0], [0], [1], [0, 0, 1, 1], [], []>} : vector<8x128xbf16>, vector<128x384xbf16>, vector<8x384xf32> -> vector<8x384xf32>
    %c0_16 = arith.constant 0 : index
    %c0_17 = arith.constant 0 : index
    %c0_18 = arith.constant 0 : index
    %34 = vector.load %arg7[%c0_16, %c0_17, %c0_18] : memref<1x1x384xf32, #tpu.memory_space<vmem>>, vector<1x1x384xf32>
    %35 = vector.shape_cast %34 : vector<1x1x384xf32> to vector<1x384xf32>
    %36 = vector.broadcast %35 : vector<1x384xf32> to vector<8x384xf32>
    %37 = arith.addf %33, %36 : vector<8x384xf32>
    %38 = vector.extract_strided_slice %37 {offsets = [0, 0], sizes = [8, 128], strides = [1, 1]} : vector<8x384xf32> to vector<8x128xf32>
    %39 = vector.shape_cast %38 : vector<8x128xf32> to vector<8x4x32xf32>
    %40 = tpu.transpose %39, [1, 0, 2] : vector<8x4x32xf32> -> vector<4x8x32xf32>
    %41 = arith.truncf %40 : vector<4x8x32xf32> to vector<4x8x32xbf16>
    %42 = vector.extract_strided_slice %37 {offsets = [0, 128], sizes = [8, 128], strides = [1, 1]} : vector<8x384xf32> to vector<8x128xf32>
    %43 = vector.shape_cast %42 : vector<8x128xf32> to vector<8x4x32xf32>
    %44 = tpu.transpose %43, [1, 0, 2] : vector<8x4x32xf32> -> vector<4x8x32xf32>
    %45 = arith.truncf %44 : vector<4x8x32xf32> to vector<4x8x32xbf16>
    %46 = vector.extract_strided_slice %37 {offsets = [0, 256], sizes = [8, 128], strides = [1, 1]} : vector<8x384xf32> to vector<8x128xf32>
    %47 = vector.shape_cast %46 : vector<8x128xf32> to vector<8x4x32xf32>
    %48 = tpu.transpose %47, [1, 0, 2] : vector<8x4x32xf32> -> vector<4x8x32xf32>
    %49 = arith.truncf %48 : vector<4x8x32xf32> to vector<4x8x32xbf16>
    "tpu.trace_start"() <{level = 10 : i32, message = "nqd,nkd->nqk"}> : () -> ()
    %cst_19 = arith.constant dense<0.000000e+00> : vector<4x8x8xf32>
    %50 = tpu.matmul %41, %45, %cst_19 {dimension_numbers = #tpu.dot_dimension_numbers<[2], [2], [1], [1], [0, 0, 0, 1, 1, 1], [0], [0]>} : vector<4x8x32xbf16>, vector<4x8x32xbf16>, vector<4x8x8xf32> -> vector<4x8x8xf32>
    "tpu.trace_stop"() : () -> ()
    %cst_20 = arith.constant 2.500000e-01 : f32
    %51 = vector.broadcast %cst_20 : f32 to vector<4x8x8xf32>
    %52 = arith.mulf %50, %51 : vector<4x8x8xf32>
    %c0_21 = arith.constant 0 : index
    %c0_22 = arith.constant 0 : index
    %53 = vector.load %arg3[%c0_21, %c0_22] : memref<8x8xf32, #tpu.memory_space<vmem>>, vector<8x8xf32>
    %54 = vector.shape_cast %53 : vector<8x8xf32> to vector<1x8x8xf32>
    %55 = vector.broadcast %54 : vector<1x8x8xf32> to vector<4x8x8xf32>
    %56 = arith.addf %52, %55 : vector<4x8x8xf32>
    %cst_23 = arith.constant dense<0xFF800000> : vector<4x8xf32>
    %57 = vector.multi_reduction <maximumf>, %56, %cst_23 [2] : vector<4x8x8xf32> to vector<4x8xf32>
    %58 = vector.shape_cast %57 : vector<4x8xf32> to vector<4x8x1xf32>
    %59 = vector.broadcast %58 : vector<4x8x1xf32> to vector<4x8x8xf32>
    %60 = arith.subf %56, %59 : vector<4x8x8xf32>
    %61 = math.exp %60 : vector<4x8x8xf32>
    %cst_24 = arith.constant dense<0.000000e+00> : vector<4x8xf32>
    %62 = vector.multi_reduction <add>, %61, %cst_24 [2] : vector<4x8x8xf32> to vector<4x8xf32>
    %63 = vector.shape_cast %62 : vector<4x8xf32> to vector<4x8x1xf32>
    %64 = vector.broadcast %63 : vector<4x8x1xf32> to vector<4x8x8xf32>
    %65 = arith.divf %61, %64 : vector<4x8x8xf32>
    %66 = arith.truncf %65 : vector<4x8x8xf32> to vector<4x8x8xbf16>
    "tpu.trace_start"() <{level = 10 : i32, message = "nqk,nkd->nqd"}> : () -> ()
    %cst_25 = arith.constant dense<0.000000e+00> : vector<4x8x32xf32>
    %67 = tpu.matmul %66, %49, %cst_25 {dimension_numbers = #tpu.dot_dimension_numbers<[2], [1], [1], [2], [0, 0, 0, 1, 1, 2], [0], [0]>} : vector<4x8x8xbf16>, vector<4x8x32xbf16>, vector<4x8x32xf32> -> vector<4x8x32xf32>
    "tpu.trace_stop"() : () -> ()
    %68 = tpu.transpose %67, [1, 0, 2] : vector<4x8x32xf32> -> vector<8x4x32xf32>
    %69 = vector.shape_cast %68 : vector<8x4x32xf32> to vector<8x128xf32>
    %70 = arith.truncf %69 : vector<8x128xf32> to vector<8x128xbf16>
    %c0_26 = arith.constant 0 : index
    %c0_27 = arith.constant 0 : index
    %c0_28 = arith.constant 0 : index
    %71 = vector.load %arg8[%c0_26, %c0_27, %c0_28] : memref<1x128x128xbf16, #tpu.memory_space<vmem>>, vector<1x128x128xbf16>
    %72 = vector.shape_cast %71 : vector<1x128x128xbf16> to vector<128x128xbf16>
    %cst_29 = arith.constant dense<0.000000e+00> : vector<8x128xf32>
    %73 = tpu.matmul %70, %72, %cst_29 {dimension_numbers = #tpu.dot_dimension_numbers<[1], [0], [0], [1], [0, 0, 1, 1], [], []>} : vector<8x128xbf16>, vector<128x128xbf16>, vector<8x128xf32> -> vector<8x128xf32>
    %c0_30 = arith.constant 0 : index
    %c0_31 = arith.constant 0 : index
    %c0_32 = arith.constant 0 : index
    %74 = vector.load %arg9[%c0_30, %c0_31, %c0_32] : memref<1x1x128xf32, #tpu.memory_space<vmem>>, vector<1x1x128xf32>
    %75 = vector.shape_cast %74 : vector<1x1x128xf32> to vector<1x128xf32>
    %76 = vector.broadcast %75 : vector<1x128xf32> to vector<8x128xf32>
    %77 = arith.addf %73, %76 : vector<8x128xf32>
    %78 = arith.addf %3, %77 : vector<8x128xf32>
    %79 = arith.truncf %78 : vector<8x128xf32> to vector<8x128xbf16>
    %cst_33 = arith.constant 0.000000e+00 : f32
    %80 = vector.broadcast %cst_33 : f32 to vector<8x128xf32>
    %c0_34 = arith.constant 0 : index
    %c0_35 = arith.constant 0 : index
    %c0_36 = arith.constant 0 : index
    %81 = vector.load %arg10[%c0_34, %c0_35, %c0_36] : memref<1x128x256xbf16, #tpu.memory_space<vmem>>, vector<1x128x256xbf16>
    %82 = vector.shape_cast %81 : vector<1x128x256xbf16> to vector<128x256xbf16>
    %cst_37 = arith.constant dense<0.000000e+00> : vector<8x256xf32>
    %83 = tpu.matmul %79, %82, %cst_37 {dimension_numbers = #tpu.dot_dimension_numbers<[1], [0], [0], [1], [0, 0, 1, 1], [], []>} : vector<8x128xbf16>, vector<128x256xbf16>, vector<8x256xf32> -> vector<8x256xf32>
    %c0_38 = arith.constant 0 : index
    %c0_39 = arith.constant 0 : index
    %c0_40 = arith.constant 0 : index
    %84 = vector.load %arg11[%c0_38, %c0_39, %c0_40] : memref<1x1x256xf32, #tpu.memory_space<vmem>>, vector<1x1x256xf32>
    %85 = vector.shape_cast %84 : vector<1x1x256xf32> to vector<1x256xf32>
    %86 = vector.broadcast %85 : vector<1x256xf32> to vector<8x256xf32>
    %87 = arith.addf %83, %86 : vector<8x256xf32>
    %cst_41 = arith.constant 5.000000e-01 : f32
    %88 = vector.broadcast %cst_41 : f32 to vector<8x256xf32>
    %89 = arith.mulf %88, %87 : vector<8x256xf32>
    %cst_42 = arith.constant 0.707106769 : f32
    %90 = vector.broadcast %cst_42 : f32 to vector<8x256xf32>
    %91 = arith.mulf %87, %90 : vector<8x256xf32>
    %92 = math.erf %91 : vector<8x256xf32>
    %cst_43 = arith.constant 1.000000e+00 : f32
    %93 = vector.broadcast %cst_43 : f32 to vector<8x256xf32>
    %94 = arith.addf %93, %92 : vector<8x256xf32>
    %95 = arith.mulf %89, %94 : vector<8x256xf32>
    %96 = arith.truncf %95 : vector<8x256xf32> to vector<8x256xbf16>
    %c0_44 = arith.constant 0 : index
    %c0_45 = arith.constant 0 : index
    %c0_46 = arith.constant 0 : index
    %97 = vector.load %arg12[%c0_44, %c0_45, %c0_46] : memref<1x256x128xbf16, #tpu.memory_space<vmem>>, vector<1x256x128xbf16>
    %98 = vector.shape_cast %97 : vector<1x256x128xbf16> to vector<256x128xbf16>
    %cst_47 = arith.constant dense<0.000000e+00> : vector<8x128xf32>
    %99 = tpu.matmul %96, %98, %cst_47 {dimension_numbers = #tpu.dot_dimension_numbers<[1], [0], [0], [1], [0, 0, 1, 1], [], []>} : vector<8x256xbf16>, vector<256x128xbf16>, vector<8x128xf32> -> vector<8x128xf32>
    %100 = arith.addf %80, %99 : vector<8x128xf32>
    %101 = arith.addf %78, %100 : vector<8x128xf32>
    %c0_48 = arith.constant 0 : index
    %c0_49 = arith.constant 0 : index
    %c0_50 = arith.constant 0 : index
    %102 = vector.load %arg13[%c0_48, %c0_49, %c0_50] : memref<1x1x128xf32, #tpu.memory_space<vmem>>, vector<1x1x128xf32>
    %103 = vector.shape_cast %102 : vector<1x1x128xf32> to vector<1x128xf32>
    %104 = vector.broadcast %103 : vector<1x128xf32> to vector<8x128xf32>
    %105 = arith.addf %101, %104 : vector<8x128xf32>
    %c0_51 = arith.constant 0 : index
    %c0_52 = arith.constant 0 : index
    %106 = vector.load %arg17[%c0_51, %c0_52] : memref<8x128xf32, #tpu.memory_space<vmem>>, vector<8x128xf32>
    tpu.vector_store %arg17[%c0_51, %c0_52], %105 {strides = array<i32>} : memref<8x128xf32, #tpu.memory_space<vmem>>, vector<8x128xf32>,
    %c1_i32 = arith.constant 1 : i32
    %107 = arith.cmpi eq, %arg1, %c1_i32 : i32
    %108 = arith.extui %107 : i1 to i32
    %c0_i32_53 = arith.constant 0 : i32
    %109 = arith.cmpi ne, %108, %c0_i32_53 : i32
    scf.if %109 {
      %110 = arith.truncf %105 : vector<8x128xf32> to vector<8x128xbf16>
      %c0_54 = arith.constant 0 : index
      %c0_55 = arith.constant 0 : index
      %111 = vector.load %arg14[%c0_54, %c0_55] : memref<128x128xbf16, #tpu.memory_space<vmem>>, vector<128x128xbf16>
      %cst_56 = arith.constant dense<0.000000e+00> : vector<8x128xf32>
      %112 = tpu.matmul %110, %111, %cst_56 {dimension_numbers = #tpu.dot_dimension_numbers<[1], [0], [0], [1], [0, 0, 1, 1], [], []>} : vector<8x128xbf16>, vector<128x128xbf16>, vector<8x128xf32> -> vector<8x128xf32>
      %c0_57 = arith.constant 0 : index
      %c0_58 = arith.constant 0 : index
      %113 = vector.load %arg15[%c0_57, %c0_58] : memref<1x128xf32, #tpu.memory_space<vmem>>, vector<1x128xf32>
      %114 = vector.broadcast %113 : vector<1x128xf32> to vector<8x128xf32>
      %115 = arith.addf %112, %114 : vector<8x128xf32>
      %cst_59 = arith.constant dense<0xFF800000> : vector<8xf32>
      %116 = vector.multi_reduction <maximumf>, %115, %cst_59 [1] : vector<8x128xf32> to vector<8xf32>
      %117 = vector.shape_cast %116 : vector<8xf32> to vector<8x1xf32>
      %118 = vector.broadcast %117 : vector<8x1xf32> to vector<8x128xf32>
      %119 = arith.subf %115, %118 : vector<8x128xf32>
      %120 = math.exp %119 : vector<8x128xf32>
      %cst_60 = arith.constant dense<0.000000e+00> : vector<8xf32>
      %121 = vector.multi_reduction <add>, %120, %cst_60 [1] : vector<8x128xf32> to vector<8xf32>
      %122 = vector.shape_cast %121 : vector<8xf32> to vector<8x1xf32>
      %123 = vector.broadcast %122 : vector<8x1xf32> to vector<8x128xf32>
      %124 = arith.divf %120, %123 : vector<8x128xf32>
      %c0_61 = arith.constant 0 : index
      %c0_62 = arith.constant 0 : index
      %125 = vector.load %arg16[%c0_61, %c0_62] : memref<8x128xf32, #tpu.memory_space<vmem>>, vector<8x128xf32>
      tpu.vector_store %arg16[%c0_61, %c0_62], %124 {strides = array<i32>} : memref<8x128xf32, #tpu.memory_space<vmem>>, vector<8x128xf32>,
    } else {
    }
    return
  }
  func.func @transform_1(%arg0: i32, %arg1: i32) -> (i32, i32) {
    %c0_i32 = arith.constant 0 : i32
    %c0_i32_0 = arith.constant 0 : i32
    %c0_i32_1 = arith.constant 0 : i32
    return %c0_i32, %c0_i32_0 : i32, i32
  }
  func.func @transform_2(%arg0: i32, %arg1: i32) -> (i32, i32, i32) {
    %c0_i32 = arith.constant 0 : i32
    %c0_i32_0 = arith.constant 0 : i32
    %c0_i32_1 = arith.constant 0 : i32
    return %arg1, %c0_i32, %c0_i32_0 : i32, i32, i32
  }
  func.func @transform_3(%arg0: i32, %arg1: i32) -> (i32, i32, i32) {
    %c0_i32 = arith.constant 0 : i32
    %c0_i32_0 = arith.constant 0 : i32
    %c0_i32_1 = arith.constant 0 : i32
    return %arg1, %c0_i32, %c0_i32_0 : i32, i32, i32
  }
  func.func @transform_4(%arg0: i32, %arg1: i32) -> (i32, i32, i32) {
    %c0_i32 = arith.constant 0 : i32
    %c0_i32_0 = arith.constant 0 : i32
    %c0_i32_1 = arith.constant 0 : i32
    return %arg1, %c0_i32, %c0_i32_0 : i32, i32, i32
  }
  func.func @transform_5(%arg0: i32, %arg1: i32) -> (i32, i32, i32) {
    %c0_i32 = arith.constant 0 : i32
    %c0_i32_0 = arith.constant 0 : i32
    %c0_i32_1 = arith.constant 0 : i32
    return %arg1, %c0_i32, %c0_i32_0 : i32, i32, i32
  }
  func.func @transform_6(%arg0: i32, %arg1: i32) -> (i32, i32, i32) {
    %c0_i32 = arith.constant 0 : i32
    %c0_i32_0 = arith.constant 0 : i32
    %c0_i32_1 = arith.constant 0 : i32
    return %arg1, %c0_i32, %c0_i32_0 : i32, i32, i32
  }
  func.func @transform_7(%arg0: i32, %arg1: i32) -> (i32, i32, i32) {
    %c0_i32 = arith.constant 0 : i32
    %c0_i32_0 = arith.constant 0 : i32
    %c0_i32_1 = arith.constant 0 : i32
    return %arg1, %c0_i32, %c0_i32_0 : i32, i32, i32
  }
  func.func @transform_8(%arg0: i32, %arg1: i32) -> (i32, i32, i32) {
    %c0_i32 = arith.constant 0 : i32
    %c0_i32_0 = arith.constant 0 : i32
    %c0_i32_1 = arith.constant 0 : i32
    return %arg1, %c0_i32, %c0_i32_0 : i32, i32, i32
  }
  func.func @transform_9(%arg0: i32, %arg1: i32) -> (i32, i32, i32) {
    %c0_i32 = arith.constant 0 : i32
    %c0_i32_0 = arith.constant 0 : i32
    %c0_i32_1 = arith.constant 0 : i32
    return %arg1, %c0_i32, %c0_i32_0 : i32, i32, i32
  }
  func.func @transform_10(%arg0: i32, %arg1: i32) -> (i32, i32, i32) {
    %c0_i32 = arith.constant 0 : i32
    %c0_i32_0 = arith.constant 0 : i32
    %c0_i32_1 = arith.constant 0 : i32
    return %arg1, %c0_i32, %c0_i32_0 : i32, i32, i32
  }
  func.func @transform_11(%arg0: i32, %arg1: i32) -> (i32, i32, i32) {
    %c0_i32 = arith.constant 0 : i32
    %c0_i32_0 = arith.constant 0 : i32
    %c0_i32_1 = arith.constant 0 : i32
    return %arg1, %c0_i32, %c0_i32_0 : i32, i32, i32
  }
  func.func @transform_12(%arg0: i32, %arg1: i32) -> (i32, i32) {
    %c0_i32 = arith.constant 0 : i32
    %c0_i32_0 = arith.constant 0 : i32
    %c0_i32_1 = arith.constant 0 : i32
    return %c0_i32, %c0_i32_0 : i32, i32
  }
  func.func @transform_13(%arg0: i32, %arg1: i32) -> (i32, i32) {
    %c0_i32 = arith.constant 0 : i32
    %c0_i32_0 = arith.constant 0 : i32
    %c0_i32_1 = arith.constant 0 : i32
    return %c0_i32, %c0_i32_0 : i32, i32
  }
  func.func @transform_14(%arg0: i32, %arg1: i32) -> (i32, i32) {
    %c0_i32 = arith.constant 0 : i32
    %c0_i32_0 = arith.constant 0 : i32
    return %arg0, %c0_i32 : i32, i32
  }
}

</mosaic_0001>

<llo_original>
// kernel: tpu_custom_call.1
$region0: #{tpu_custom_call.1}
  #allocation0 [shape = 'u32[]', space=smem, size = 0x4, offset = 0x4, fixed_abs, tag = 'smem constant byte address 0x4 - core index']
  #allocation1 [shape = 'u32[144,128]{1,0:T(1,128)}', space=vmem, size = 0x12000, scoped, tag = 'internal scratch']
  #allocation2 [shape = 'f32[8,128]{1,0:T(8,128)}', space=vmem, size = 0x1000, scoped, tag = 'scratch operand']
  #allocation3 [shape = 's32[1]{0}', space=sflag, size = 0x4, scoped, tag = 'scratch operand']
  #allocation19 [shape = 's32[]', space=sflag, size = 0x4, offset = 0, fixed_abs, tag = 'sflag constant byte address 0x0 - dummy sync flag']
  #allocation20 [shape = 's32[]', space=sflag, size = 0x4, offset = 0, fixed_abs, tag = 'sflag constant byte address 0x0 - dummy sync flag']
  #allocation21 [shape = 'u32[]', space=smem, size = 0x4, offset = 0x44, fixed_abs, tag = 'smem constant byte address 0x44 - assertion arg 0']
  #allocation22 [shape = 'u32[]', space=smem, size = 0x4, offset = 0x48, fixed_abs, tag = 'smem constant byte address 0x48 - assertion arg 1']
  %s0 = inlined_call_operand.hbm [shape: f32[16,128], index: 0, kind: input, shape index: {}]
  %s1 = inlined_call_operand.hbm [shape: f32[8,8], index: 1, kind: input, shape index: {}]
  %s2 = inlined_call_operand.hbm [shape: f32[2,1,128], index: 2, kind: input, shape index: {}]
  %s3 = inlined_call_operand.hbm [shape: f32[2,1,128], index: 3, kind: input, shape index: {}]
  %s4 = inlined_call_operand.hbm [shape: bf16[2,128,384], index: 4, kind: input, shape index: {}]
  %s5 = inlined_call_operand.vmem [shape: f32[2,1,384], index: 5, kind: input, shape index: {}]
  %s6 = inlined_call_operand.hbm [shape: bf16[2,128,128], index: 6, kind: input, shape index: {}]
  %s7 = inlined_call_operand.vmem [shape: f32[2,1,128], index: 7, kind: input, shape index: {}]
  %s8 = inlined_call_operand.hbm [shape: bf16[2,128,256], index: 8, kind: input, shape index: {}]
  %s9 = inlined_call_operand.vmem [shape: f32[2,1,256], index: 9, kind: input, shape index: {}]
  %s10 = inlined_call_operand.hbm [shape: bf16[2,256,128], index: 10, kind: input, shape index: {}]
  %s11 = inlined_call_operand.vmem [shape: f32[2,1,128], index: 11, kind: input, shape index: {}]
  %s12 = inlined_call_operand.hbm [shape: bf16[128,128], index: 12, kind: input, shape index: {}]
  %s13 = inlined_call_operand.vmem [shape: f32[1,128], index: 13, kind: input, shape index: {}]
  %s14 = inlined_call_operand.hbm [shape: f32[16,128], index: 14, kind: output, shape index: {}]
  %s15 = sld [smem:[#allocation0]]
  $region129: #{tpu_custom_call.1} parent=0
    _
  %s17 = ssub.s32 1, %s15
  %s18 = scalar_select 0, %s17, %s15
  $region1: #{tpu_custom_call.1} parent=0
    #allocation4 [shape = 'u8[4096]{0}', space=vmem, size = 0x1000, scoped, tag = 'input window, operand 1, single buffered']
    #allocation5 [shape = 's32[2]{0}', space=sflag, size = 0x8, scoped, tag = 'scoped memory for tpu_custom_call.1']
    #allocation6 [shape = 's32[2]{0}', space=sflag, size = 0x8, scoped, tag = 'scoped memory for tpu_custom_call.1']
    #allocation7 [shape = 'u8[1024]{0}', space=vmem, size = 0x400, scoped, tag = 'input window, operand 2']
    #allocation8 [shape = 's32[2]{0}', space=sflag, size = 0x8, scoped, tag = 'scoped memory for tpu_custom_call.1']
    #allocation9 [shape = 'u8[1024]{0}', space=vmem, size = 0x400, scoped, tag = 'input window, operand 3']
    #allocation10 [shape = 'u8[196608]{0}', space=vmem, size = 0x30000, scoped, tag = 'input window, operand 4']
    #allocation11 [shape = 's32[2]{0}', space=sflag, size = 0x8, scoped, tag = 'scoped memory for tpu_custom_call.1']
    #allocation12 [shape = 'u8[65536]{0}', space=vmem, size = 0x10000, scoped, tag = 'input window, operand 6']
    #allocation13 [shape = 'u8[131072]{0}', space=vmem, size = 0x20000, scoped, tag = 'input window, operand 8']
    #allocation14 [shape = 's32[2]{0}', space=sflag, size = 0x8, scoped, tag = 'scoped memory for tpu_custom_call.1']
    #allocation15 [shape = 'u8[131072]{0}', space=vmem, size = 0x20000, scoped, tag = 'input window, operand 10']
    #allocation16 [shape = 'u8[32768]{0}', space=vmem, size = 0x8000, scoped, tag = 'input window, operand 12, single buffered']
    #allocation17 [shape = 's32[1]{0}', space=sflag, size = 0x4, scoped, tag = 'scoped memory for tpu_custom_call.1']
    #allocation18 [shape = 'u8[8192]{0}', space=vmem, size = 0x2000, scoped, tag = 'output window, operand 0']
    %19 = vsyncpa [#allocation5], 0
    %20 = vsyncpa [#allocation8], 0
    %s21 = scalar_lea.sflag [#allocation8], 1
    %22 = vsyncpa %s21, 0
    %23 = vsyncpa [#allocation11], 0
    %s24 = scalar_lea.sflag [#allocation11], 1
    %25 = vsyncpa %s24, 0
    %26 = vsyncpa [#allocation14], 0
    %s27 = scalar_lea.sflag [#allocation14], 1
    %28 = vsyncpa %s27, 0
    %29 = vsyncpa [#allocation17], 0
    %30 = vsyncpa [#allocation6], 0
    %s31 = scalar_lea.sflag [#allocation6], 1
    %32 = vsyncpa %s31, 0
    loop: start=0, step=1, limit=6
    $region2: #{tpu_custom_call.1} parent=1 // loop_pre_header
      _
    $region3: #{tpu_custom_call.1} parent=1 // loop_header
      %s34 = sphi 0, %s38
      %p35 = scmp.ge.s32.totalorder %s34, 6
      %s41 = sphi 0, %s53
      %s42 = sphi 0, %s49
      %s43 = sphi 0, %s41
      %s44 = sphi 0, %s42
      %s45 = sphi 0, %s43
      %s46 = sphi 0, %s44
      %s54 = sphi 0, %s54
      %s56 = sphi 0, %s54
      %s57 = sphi 0, %s56
      %s71 = sphi 0, %s57
      %s77 = sphi 0, %s79
      %s80 = sphi 0, %s77
      %s81 = sphi 0, %s80
      %s97 = sphi 0, %s81
      %s103 = sphi 0, %s105
      %s106 = sphi 0, %s103
      %s107 = sphi 0, %s106
      %s123 = sphi 0, %s107
      %s129 = sphi 0, %s131
      %s132 = sphi 0, %s129
      %s133 = sphi 0, %s132
      %s149 = sphi 0, %s133
      %s155 = sphi 0, %s157
      %s158 = sphi 0, %s155
      %s159 = sphi 0, %s158
      %s175 = sphi 0, %s159
      %s181 = sphi 0, %s183
      %s184 = sphi 0, %s181
      %s185 = sphi 0, %s184
      %s201 = sphi 0, %s185
      %s207 = sphi 0, %s209
      %s210 = sphi 0, %s207
      %s211 = sphi 0, %s210
      %s227 = sphi 0, %s211
      %s233 = sphi 0, %s235
      %s236 = sphi 0, %s233
      %s237 = sphi 0, %s236
      %s253 = sphi 0, %s237
      %s259 = sphi 0, %s261
      %s262 = sphi 0, %s259
      %s263 = sphi 0, %s262
      %s279 = sphi 0, %s263
      %s285 = sphi 0, %s287
      %s288 = sphi 0, %s285
      %s289 = sphi 0, %s288
      %s305 = sphi 0, %s289
      %s311 = sphi 0, %s313
      %s314 = sphi 0, %s311
      %s315 = sphi 0, %s314
      %s331 = sphi 0, %s315
      %s335 = sphi 0, %s335
      %s337 = sphi 0, %s335
      %s338 = sphi 0, %s337
      %s352 = sphi 0, %s338
      %s356 = sphi 0, %s356
      %s358 = sphi 0, %s356
      %s359 = sphi 0, %s358
      %s373 = sphi 0, %s359
      %s379 = sphi 0, %s381
      %s382 = sphi 0, %s379
      %s383 = sphi 0, %s382
      %s399 = sphi 0, %s383
    $region4: #{tpu_custom_call.1} parent=1 // loop_header_branch
      %37 = sbr.rel (%p35) target = $region8
    $region5: #{tpu_custom_call.1} parent=1 // loop_body
      %s39 = ssub.s32 %s34, 1
      %s40 = ssub.s32 %s34, 2
      %s47 = sadd.s32 1, %s42
      %p48 = scmp.ge.s32.totalorder %s47, 2
      %s49 = scalar_select %p48, 0, %s47
      %s50 = sadd.s32 1, %s41
      %s51 = scalar_select %p48, %s50, %s41
      %p52 = scmp.ge.s32.totalorder %s51, 2
      %s53 = scalar_select %p52, 0, %s51
      %s55 = sadd.s32 %s54, 1
      %p58 = scmp.eq.s32.totalorder %s34, 3
      %p59 = scmp.ne.s32.totalorder %s54, %s56
      %p60 = scmp.eq.s32.totalorder %s34, 0
      %p61 = por %p59, %p60
      %p62 = scmp.ne.s32.totalorder %s54, %s56
      %p63 = scmp.eq.s32.totalorder %s39, 3
      %p64 = por %p62, %p63
      %p65 = scmp.ne.s32.totalorder %s56, %s57
      %p66 = scmp.eq.s32.totalorder %s39, 0
      %p67 = por %p65, %p66
      %p68 = scmp.ne.s32.totalorder %s56, %s57
      %p69 = scmp.eq.s32.totalorder %s40, 3
      %p70 = por %p68, %p69
      %p72 = scmp.ne.s32.totalorder %s57, %s71
      %p73 = scmp.eq.s32.totalorder %s40, 0
      %p74 = por %p72, %p73
      %s75 = ssub.s32 %s42, %s49
      %p76 = scmp.eq.s32.totalorder %s75, 0
      %s78 = sadd.s32 %s77, 1
      %s79 = scalar_select %p76, %s77, %s78
      %p82 = pneg %p76
      %p83 = scmp.eq.s32.totalorder %s34, 3
      %p84 = por %p82, %p83
      %p85 = scmp.ne.s32.totalorder %s77, %s80
      %p86 = scmp.eq.s32.totalorder %s34, 0
      %p87 = por %p85, %p86
      %p88 = scmp.ne.s32.totalorder %s77, %s80
      %p89 = scmp.eq.s32.totalorder %s39, 3
      %p90 = por %p88, %p89
      %p91 = scmp.ne.s32.totalorder %s80, %s81
      %p92 = scmp.eq.s32.totalorder %s39, 0
      %p93 = por %p91, %p92
      %p94 = scmp.ne.s32.totalorder %s80, %s81
      %p95 = scmp.eq.s32.totalorder %s40, 3
      %p96 = por %p94, %p95
      %p98 = scmp.ne.s32.totalorder %s81, %s97
      %p99 = scmp.eq.s32.totalorder %s40, 0
      %p100 = por %p98, %p99
      %s101 = ssub.s32 %s42, %s49
      %p102 = scmp.eq.s32.totalorder %s101, 0
      %s104 = sadd.s32 %s103, 1
      %s105 = scalar_select %p102, %s103, %s104
      %p108 = pneg %p102
      %p109 = scmp.eq.s32.totalorder %s34, 3
      %p110 = por %p108, %p109
      %p111 = scmp.ne.s32.totalorder %s103, %s106
      %p112 = scmp.eq.s32.totalorder %s34, 0
      %p113 = por %p111, %p112
      %p114 = scmp.ne.s32.totalorder %s103, %s106
      %p115 = scmp.eq.s32.totalorder %s39, 3
      %p116 = por %p114, %p115
      %p117 = scmp.ne.s32.totalorder %s106, %s107
      %p118 = scmp.eq.s32.totalorder %s39, 0
      %p119 = por %p117, %p118
      %p120 = scmp.ne.s32.totalorder %s106, %s107
      %p121 = scmp.eq.s32.totalorder %s40, 3
      %p122 = por %p120, %p121
      %p124 = scmp.ne.s32.totalorder %s107, %s123
      %p125 = scmp.eq.s32.totalorder %s40, 0
      %p126 = por %p124, %p125
      %s127 = ssub.s32 %s42, %s49
      %p128 = scmp.eq.s32.totalorder %s127, 0
      %s130 = sadd.s32 %s129, 1
      %s131 = scalar_select %p128, %s129, %s130
      %p134 = pneg %p128
      %p135 = scmp.eq.s32.totalorder %s34, 3
      %p136 = por %p134, %p135
      %p137 = scmp.ne.s32.totalorder %s129, %s132
      %p138 = scmp.eq.s32.totalorder %s34, 0
      %p139 = por %p137, %p138
      %p140 = scmp.ne.s32.totalorder %s129, %s132
      %p141 = scmp.eq.s32.totalorder %s39, 3
      %p142 = por %p140, %p141
      %p143 = scmp.ne.s32.totalorder %s132, %s133
      %p144 = scmp.eq.s32.totalorder %s39, 0
      %p145 = por %p143, %p144
      %p146 = scmp.ne.s32.totalorder %s132, %s133
      %p147 = scmp.eq.s32.totalorder %s40, 3
      %p148 = por %p146, %p147
      %p150 = scmp.ne.s32.totalorder %s133, %s149
      %p151 = scmp.eq.s32.totalorder %s40, 0
      %p152 = por %p150, %p151
      %s153 = ssub.s32 %s42, %s49
      %p154 = scmp.eq.s32.totalorder %s153, 0
      %s156 = sadd.s32 %s155, 1
      %s157 = scalar_select %p154, %s155, %s156
      %p160 = pneg %p154
      %p161 = scmp.eq.s32.totalorder %s34, 3
      %p162 = por %p160, %p161
      %p163 = scmp.ne.s32.totalorder %s155, %s158
      %p164 = scmp.eq.s32.totalorder %s34, 0
      %p165 = por %p163, %p164
      %p166 = scmp.ne.s32.totalorder %s155, %s158
      %p167 = scmp.eq.s32.totalorder %s39, 3
      %p168 = por %p166, %p167
      %p169 = scmp.ne.s32.totalorder %s158, %s159
      %p170 = scmp.eq.s32.totalorder %s39, 0
      %p171 = por %p169, %p170
      %p172 = scmp.ne.s32.totalorder %s158, %s159
      %p173 = scmp.eq.s32.totalorder %s40, 3
      %p174 = por %p172, %p173
      %p176 = scmp.ne.s32.totalorder %s159, %s175
      %p177 = scmp.eq.s32.totalorder %s40, 0
      %p178 = por %p176, %p177
      %s179 = ssub.s32 %s42, %s49
      %p180 = scmp.eq.s32.totalorder %s179, 0
      %s182 = sadd.s32 %s181, 1
      %s183 = scalar_select %p180, %s181, %s182
      %p186 = pneg %p180
      %p187 = scmp.eq.s32.totalorder %s34, 3
      %p188 = por %p186, %p187
      %p189 = scmp.ne.s32.totalorder %s181, %s184
      %p190 = scmp.eq.s32.totalorder %s34, 0
      %p191 = por %p189, %p190
      %p192 = scmp.ne.s32.totalorder %s181, %s184
      %p193 = scmp.eq.s32.totalorder %s39, 3
      %p194 = por %p192, %p193
      %p195 = scmp.ne.s32.totalorder %s184, %s185
      %p196 = scmp.eq.s32.totalorder %s39, 0
      %p197 = por %p195, %p196
      %p198 = scmp.ne.s32.totalorder %s184, %s185
      %p199 = scmp.eq.s32.totalorder %s40, 3
      %p200 = por %p198, %p199
      %p202 = scmp.ne.s32.totalorder %s185, %s201
      %p203 = scmp.eq.s32.totalorder %s40, 0
      %p204 = por %p202, %p203
      %s205 = ssub.s32 %s42, %s49
      %p206 = scmp.eq.s32.totalorder %s205, 0
      %s208 = sadd.s32 %s207, 1
      %s209 = scalar_select %p206, %s207, %s208
      %p212 = pneg %p206
      %p213 = scmp.eq.s32.totalorder %s34, 3
      %p214 = por %p212, %p213
      %p215 = scmp.ne.s32.totalorder %s207, %s210
      %p216 = scmp.eq.s32.totalorder %s34, 0
      %p217 = por %p215, %p216
      %p218 = scmp.ne.s32.totalorder %s207, %s210
      %p219 = scmp.eq.s32.totalorder %s39, 3
      %p220 = por %p218, %p219
      %p221 = scmp.ne.s32.totalorder %s210, %s211
      %p222 = scmp.eq.s32.totalorder %s39, 0
      %p223 = por %p221, %p222
      %p224 = scmp.ne.s32.totalorder %s210, %s211
      %p225 = scmp.eq.s32.totalorder %s40, 3
      %p226 = por %p224, %p225
      %p228 = scmp.ne.s32.totalorder %s211, %s227
      %p229 = scmp.eq.s32.totalorder %s40, 0
      %p230 = por %p228, %p229
      %s231 = ssub.s32 %s42, %s49
      %p232 = scmp.eq.s32.totalorder %s231, 0
      %s234 = sadd.s32 %s233, 1
      %s235 = scalar_select %p232, %s233, %s234
      %p238 = pneg %p232
      %p239 = scmp.eq.s32.totalorder %s34, 3
      %p240 = por %p238, %p239
      %p241 = scmp.ne.s32.totalorder %s233, %s236
      %p242 = scmp.eq.s32.totalorder %s34, 0
      %p243 = por %p241, %p242
      %p244 = scmp.ne.s32.totalorder %s233, %s236
      %p245 = scmp.eq.s32.totalorder %s39, 3
      %p246 = por %p244, %p245
      %p247 = scmp.ne.s32.totalorder %s236, %s237
      %p248 = scmp.eq.s32.totalorder %s39, 0
      %p249 = por %p247, %p248
      %p250 = scmp.ne.s32.totalorder %s236, %s237
      %p251 = scmp.eq.s32.totalorder %s40, 3
      %p252 = por %p250, %p251
      %p254 = scmp.ne.s32.totalorder %s237, %s253
      %p255 = scmp.eq.s32.totalorder %s40, 0
      %p256 = por %p254, %p255
      %s257 = ssub.s32 %s42, %s49
      %p258 = scmp.eq.s32.totalorder %s257, 0
      %s260 = sadd.s32 %s259, 1
      %s261 = scalar_select %p258, %s259, %s260
      %p264 = pneg %p258
      %p265 = scmp.eq.s32.totalorder %s34, 3
      %p266 = por %p264, %p265
      %p267 = scmp.ne.s32.totalorder %s259, %s262
      %p268 = scmp.eq.s32.totalorder %s34, 0
      %p269 = por %p267, %p268
      %p270 = scmp.ne.s32.totalorder %s259, %s262
      %p271 = scmp.eq.s32.totalorder %s39, 3
      %p272 = por %p270, %p271
      %p273 = scmp.ne.s32.totalorder %s262, %s263
      %p274 = scmp.eq.s32.totalorder %s39, 0
      %p275 = por %p273, %p274
      %p276 = scmp.ne.s32.totalorder %s262, %s263
      %p277 = scmp.eq.s32.totalorder %s40, 3
      %p278 = por %p276, %p277
      %p280 = scmp.ne.s32.totalorder %s263, %s279
      %p281 = scmp.eq.s32.totalorder %s40, 0
      %p282 = por %p280, %p281
      %s283 = ssub.s32 %s42, %s49
      %p284 = scmp.eq.s32.totalorder %s283, 0
      %s286 = sadd.s32 %s285, 1
      %s287 = scalar_select %p284, %s285, %s286
      %p290 = pneg %p284
      %p291 = scmp.eq.s32.totalorder %s34, 3
      %p292 = por %p290, %p291
      %p293 = scmp.ne.s32.totalorder %s285, %s288
      %p294 = scmp.eq.s32.totalorder %s34, 0
      %p295 = por %p293, %p294
      %p296 = scmp.ne.s32.totalorder %s285, %s288
      %p297 = scmp.eq.s32.totalorder %s39, 3
      %p298 = por %p296, %p297
      %p299 = scmp.ne.s32.totalorder %s288, %s289
      %p300 = scmp.eq.s32.totalorder %s39, 0
      %p301 = por %p299, %p300
      %p302 = scmp.ne.s32.totalorder %s288, %s289
      %p303 = scmp.eq.s32.totalorder %s40, 3
      %p304 = por %p302, %p303
      %p306 = scmp.ne.s32.totalorder %s289, %s305
      %p307 = scmp.eq.s32.totalorder %s40, 0
      %p308 = por %p306, %p307
      %s309 = ssub.s32 %s42, %s49
      %p310 = scmp.eq.s32.totalorder %s309, 0
      %s312 = sadd.s32 %s311, 1
      %s313 = scalar_select %p310, %s311, %s312
      %p316 = pneg %p310
      %p317 = scmp.eq.s32.totalorder %s34, 3
      %p318 = por %p316, %p317
      %p319 = scmp.ne.s32.totalorder %s311, %s314
      %p320 = scmp.eq.s32.totalorder %s34, 0
      %p321 = por %p319, %p320
      %p322 = scmp.ne.s32.totalorder %s311, %s314
      %p323 = scmp.eq.s32.totalorder %s39, 3
      %p324 = por %p322, %p323
      %p325 = scmp.ne.s32.totalorder %s314, %s315
      %p326 = scmp.eq.s32.totalorder %s39, 0
      %p327 = por %p325, %p326
      %p328 = scmp.ne.s32.totalorder %s314, %s315
      %p329 = scmp.eq.s32.totalorder %s40, 3
      %p330 = por %p328, %p329
      %p332 = scmp.ne.s32.totalorder %s315, %s331
      %p333 = scmp.eq.s32.totalorder %s40, 0
      %p334 = por %p332, %p333
      %s336 = sadd.s32 %s335, 1
      %p339 = scmp.eq.s32.totalorder %s34, 3
      %p340 = scmp.ne.s32.totalorder %s335, %s337
      %p341 = scmp.eq.s32.totalorder %s34, 0
      %p342 = por %p340, %p341
      %p343 = scmp.ne.s32.totalorder %s335, %s337
      %p344 = scmp.eq.s32.totalorder %s39, 3
      %p345 = por %p343, %p344
      %p346 = scmp.ne.s32.totalorder %s337, %s338
      %p347 = scmp.eq.s32.totalorder %s39, 0
      %p348 = por %p346, %p347
      %p349 = scmp.ne.s32.totalorder %s337, %s338
      %p350 = scmp.eq.s32.totalorder %s40, 3
      %p351 = por %p349, %p350
      %p353 = scmp.ne.s32.totalorder %s338, %s352
      %p354 = scmp.eq.s32.totalorder %s40, 0
      %p355 = por %p353, %p354
      %s357 = sadd.s32 %s356, 1
      %p360 = scmp.eq.s32.totalorder %s34, 3
      %p361 = scmp.ne.s32.totalorder %s356, %s358
      %p362 = scmp.eq.s32.totalorder %s34, 0
      %p363 = por %p361, %p362
      %p364 = scmp.ne.s32.totalorder %s356, %s358
      %p365 = scmp.eq.s32.totalorder %s39, 3
      %p366 = por %p364, %p365
      %p367 = scmp.ne.s32.totalorder %s358, %s359
      %p368 = scmp.eq.s32.totalorder %s39, 0
      %p369 = por %p367, %p368
      %p370 = scmp.ne.s32.totalorder %s358, %s359
      %p371 = scmp.eq.s32.totalorder %s40, 3
      %p372 = por %p370, %p371
      %p374 = scmp.ne.s32.totalorder %s359, %s373
      %p375 = scmp.eq.s32.totalorder %s40, 0
      %p376 = por %p374, %p375
      %s377 = ssub.s32 %s41, %s53
      %p378 = scmp.eq.s32.totalorder %s377, 0
      %s380 = sadd.s32 %s379, 1
      %s381 = scalar_select %p378, %s379, %s380
      %p384 = pneg %p378
      %p385 = scmp.eq.s32.totalorder %s34, 3
      %p386 = por %p384, %p385
      %p387 = scmp.ne.s32.totalorder %s379, %s382
      %p388 = scmp.eq.s32.totalorder %s34, 0
      %p389 = por %p387, %p388
      %p390 = scmp.ne.s32.totalorder %s379, %s382
      %p391 = scmp.eq.s32.totalorder %s39, 3
      %p392 = por %p390, %p391
      %p393 = scmp.ne.s32.totalorder %s382, %s383
      %p394 = scmp.eq.s32.totalorder %s39, 0
      %p395 = por %p393, %p394
      %p396 = scmp.ne.s32.totalorder %s382, %s383
      %p397 = scmp.eq.s32.totalorder %s40, 3
      %p398 = por %p396, %p397
      %p400 = scmp.ne.s32.totalorder %s383, %s399
      %p401 = scmp.eq.s32.totalorder %s40, 0
      %p402 = por %p400, %p401
      %p403 = scmp.le.s32.totalorder 1, %s34
      %p404 = scmp.lt.s32.totalorder %s34, 5
      %p405 = pnand %p403, %p404
      %p406 = pneg %p405
      // Predicated region
      $region9: #{tpu_custom_call.1} parent=5 // pred_check
        _
      $region10: #{tpu_custom_call.1} parent=5 // pred_check_branch
        %408 = sbr.rel (%p405) target = $region12
      $region11: #{tpu_custom_call.1} parent=5 // pred_region
        %s409 = ssub.s32 %s34, 1
        // Predicated region
        $region13: #{tpu_custom_call.1} parent=11 // pred_check
          %p410 = pneg %p67
        $region14: #{tpu_custom_call.1} parent=11 // pred_check_branch
          %412 = sbr.rel (%p410) target = $region16
        $region15: #{tpu_custom_call.1} parent=11 // pred_region
          %s414 = ssub.s32 128, 128
          %415 = vsyncadd [#allocation5], %s414
          %s417 = sshll.u32 [#allocation4], 4
          %s418 = int_to_ptr.vmem [resolvable:$true] %s417
          %420 = dma.hbm_to_vmem [thread:$0]  %s1, 128, %s418, [#allocation5]
        $region16: #{tpu_custom_call.1} parent=11 // pred_fallthru
          _
        // Predicated region
        $region17: #{tpu_custom_call.1} parent=11 // pred_check
          %p421 = pneg %p348
        $region18: #{tpu_custom_call.1} parent=11 // pred_check_branch
          %423 = sbr.rel (%p421) target = $region20
        $region19: #{tpu_custom_call.1} parent=11 // pred_region
          %s425 = ssub.s32 1024, 1024
          %426 = vsyncadd [#allocation17], %s425
          %s427 = sshll.u32 [#allocation16], 4
          %s428 = int_to_ptr.vmem [resolvable:$true] %s427
          %433 = dma.hbm_to_vmem [thread:$0]  %s12, 1024, %s428, [#allocation17], 64, 64, 4
        $region20: #{tpu_custom_call.1} parent=11 // pred_fallthru
          _
        // Predicated region
        $region21: #{tpu_custom_call.1} parent=11 // pred_check
          %p434 = pneg %p369
        $region22: #{tpu_custom_call.1} parent=11 // pred_check_branch
          %436 = sbr.rel (%p434) target = $region24
        $region23: #{tpu_custom_call.1} parent=11 // pred_region
          _
        $region24: #{tpu_custom_call.1} parent=11 // pred_fallthru
          _
      $region12: #{tpu_custom_call.1} parent=5 // pred_fallthru
        _
      %p437 = scmp.lt.s32.totalorder %s34, 4
      // Predicated region
      $region25: #{tpu_custom_call.1} parent=5 // pred_check
        %p438 = pneg %p437
      $region26: #{tpu_custom_call.1} parent=5 // pred_check_branch
        %440 = sbr.rel (%p438) target = $region28
      $region27: #{tpu_custom_call.1} parent=5 // pred_region
        // Predicated region
        $region29: #{tpu_custom_call.1} parent=27 // pred_check
          %p441 = pneg %p87
        $region30: #{tpu_custom_call.1} parent=27 // pred_check_branch
          %443 = sbr.rel (%p441) target = $region32
        $region31: #{tpu_custom_call.1} parent=27 // pred_region
          %s444 = sand.u32 %s34, 1
          %s445 = scalar_lea.sflag [#allocation8], %s444
          %s446 = sand.u32 %s77, 1
          %s447 = scalar_lea.vmem [#allocation7], %s446
          %s449 = ssub.s32 16, 16
          %450 = vsyncadd %s445, %s449
          %s451 = smul.addr %s42, 16
          %s452 = scalar_lea.hbm %s2, %s451
          %s454 = sshll.u32 %s447, 4
          %s455 = int_to_ptr.vmem [resolvable:$true] %s454
          %457 = dma.hbm_to_vmem [thread:$0]  %s452, 16, %s455, %s445
        $region32: #{tpu_custom_call.1} parent=27 // pred_fallthru
          _
        // Predicated region
        $region33: #{tpu_custom_call.1} parent=27 // pred_check
          %p458 = pneg %p113
        $region34: #{tpu_custom_call.1} parent=27 // pred_check_branch
          %460 = sbr.rel (%p458) target = $region36
        $region35: #{tpu_custom_call.1} parent=27 // pred_region
          %s461 = sand.u32 %s34, 1
          %s462 = scalar_lea.sflag [#allocation8], %s461
          %s463 = sand.u32 %s103, 1
          %s464 = scalar_lea.vmem [#allocation9], %s463
          %s466 = ssub.s32 16, 16
          %467 = vsyncadd %s462, %s466
          %s468 = smul.addr %s42, 16
          %s469 = scalar_lea.hbm %s3, %s468
          %s471 = sshll.u32 %s464, 4
          %s472 = int_to_ptr.vmem [resolvable:$true] %s471
          %474 = dma.hbm_to_vmem [thread:$0]  %s469, 16, %s472, %s462
        $region36: #{tpu_custom_call.1} parent=27 // pred_fallthru
          _
        // Predicated region
        $region37: #{tpu_custom_call.1} parent=27 // pred_check
          %p475 = pneg %p139
        $region38: #{tpu_custom_call.1} parent=27 // pred_check_branch
          %477 = sbr.rel (%p475) target = $region40
        $region39: #{tpu_custom_call.1} parent=27 // pred_region
          %s478 = sand.u32 %s34, 1
          %s479 = scalar_lea.sflag [#allocation11], %s478
          %s480 = sand.u32 %s129, 1
          %s481 = smul.addr %s480, 192
          %s482 = scalar_lea.vmem [#allocation10], %s481
          %s484 = ssub.s32 3072, 3072
          %485 = vsyncadd %s479, %s484
          %s486 = smul.addr %s42, 48
          %s487 = smul.addr %s486, 64
          %s488 = scalar_lea.hbm %s4, %s487
          %s489 = sshll.u32 %s482, 4
          %s490 = int_to_ptr.vmem [resolvable:$true] %s489
          %495 = dma.hbm_to_vmem [thread:$0]  %s488, 3072, %s490, %s479, 192, 192, 12
        $region40: #{tpu_custom_call.1} parent=27 // pred_fallthru
          _
        // Predicated region
        $region41: #{tpu_custom_call.1} parent=27 // pred_check
          %p496 = pneg %p165
        $region42: #{tpu_custom_call.1} parent=27 // pred_check_branch
          %498 = sbr.rel (%p496) target = $region44
        $region43: #{tpu_custom_call.1} parent=27 // pred_region
          %p499 = scmp.lt.s32.totalorder %s42, 1
          %s500 = scalar_select %p499, %s42, 1
          %s501 = smul.addr %s500, 3
          %s502 = scalar_lea.vmem %s5, %s501
        $region44: #{tpu_custom_call.1} parent=27 // pred_fallthru
          _
        // Predicated region
        $region45: #{tpu_custom_call.1} parent=27 // pred_check
          %p503 = pneg %p191
        $region46: #{tpu_custom_call.1} parent=27 // pred_check_branch
          %505 = sbr.rel (%p503) target = $region48
        $region47: #{tpu_custom_call.1} parent=27 // pred_region
          %s506 = sand.u32 %s34, 1
          %s507 = scalar_lea.sflag [#allocation11], %s506
          %s508 = sand.u32 %s181, 1
          %s509 = smul.addr %s508, 64
          %s510 = scalar_lea.vmem [#allocation12], %s509
          %s512 = ssub.s32 1024, 1024
          %513 = vsyncadd %s507, %s512
          %s514 = smul.addr %s42, 16
          %s515 = smul.addr %s514, 64
          %s516 = scalar_lea.hbm %s6, %s515
          %s517 = sshll.u32 %s510, 4
          %s518 = int_to_ptr.vmem [resolvable:$true] %s517
          %523 = dma.hbm_to_vmem [thread:$0]  %s516, 1024, %s518, %s507, 64, 64, 4
        $region48: #{tpu_custom_call.1} parent=27 // pred_fallthru
          _
        // Predicated region
        $region49: #{tpu_custom_call.1} parent=27 // pred_check
          %p524 = pneg %p217
        $region50: #{tpu_custom_call.1} parent=27 // pred_check_branch
          %526 = sbr.rel (%p524) target = $region52
        $region51: #{tpu_custom_call.1} parent=27 // pred_region
          %p527 = scmp.lt.s32.totalorder %s42, 1
          %s528 = scalar_select %p527, %s42, 1
          %s529 = scalar_lea.vmem %s7, %s528
        $region52: #{tpu_custom_call.1} parent=27 // pred_fallthru
          _
        // Predicated region
        $region53: #{tpu_custom_call.1} parent=27 // pred_check
          %p530 = pneg %p243
        $region54: #{tpu_custom_call.1} parent=27 // pred_check_branch
          %532 = sbr.rel (%p530) target = $region56
        $region55: #{tpu_custom_call.1} parent=27 // pred_region
          %s533 = sand.u32 %s34, 1
          %s534 = scalar_lea.sflag [#allocation14], %s533
          %s535 = sand.u32 %s233, 1
          %s536 = smul.addr %s535, 128
          %s537 = scalar_lea.vmem [#allocation13], %s536
          %s539 = ssub.s32 2048, 2048
          %540 = vsyncadd %s534, %s539
          %s541 = smul.addr %s42, 32
          %s542 = smul.addr %s541, 64
          %s543 = scalar_lea.hbm %s8, %s542
          %s544 = sshll.u32 %s537, 4
          %s545 = int_to_ptr.vmem [resolvable:$true] %s544
          %550 = dma.hbm_to_vmem [thread:$0]  %s543, 2048, %s545, %s534, 128, 128, 8
        $region56: #{tpu_custom_call.1} parent=27 // pred_fallthru
          _
        // Predicated region
        $region57: #{tpu_custom_call.1} parent=27 // pred_check
          %p551 = pneg %p269
        $region58: #{tpu_custom_call.1} parent=27 // pred_check_branch
          %553 = sbr.rel (%p551) target = $region60
        $region59: #{tpu_custom_call.1} parent=27 // pred_region
          %p554 = scmp.lt.s32.totalorder %s42, 1
          %s555 = scalar_select %p554, %s42, 1
          %s556 = smul.addr %s555, 2
          %s557 = scalar_lea.vmem %s9, %s556
        $region60: #{tpu_custom_call.1} parent=27 // pred_fallthru
          _
        // Predicated region
        $region61: #{tpu_custom_call.1} parent=27 // pred_check
          %p558 = pneg %p295
        $region62: #{tpu_custom_call.1} parent=27 // pred_check_branch
          %560 = sbr.rel (%p558) target = $region64
        $region63: #{tpu_custom_call.1} parent=27 // pred_region
          %s561 = sand.u32 %s34, 1
          %s562 = scalar_lea.sflag [#allocation14], %s561
          %s563 = sand.u32 %s285, 1
          %s564 = smul.addr %s563, 128
          %s565 = scalar_lea.vmem [#allocation15], %s564
          %s567 = ssub.s32 2048, 2048
          %568 = vsyncadd %s562, %s567
          %s569 = smul.addr %s42, 32
          %s570 = smul.addr %s569, 64
          %s571 = scalar_lea.hbm %s10, %s570
          %s572 = sshll.u32 %s565, 4
          %s573 = int_to_ptr.vmem [resolvable:$true] %s572
          %578 = dma.hbm_to_vmem [thread:$0]  %s571, 2048, %s573, %s562, 64, 64, 4
        $region64: #{tpu_custom_call.1} parent=27 // pred_fallthru
          _
        // Predicated region
        $region65: #{tpu_custom_call.1} parent=27 // pred_check
          %p579 = pneg %p321
        $region66: #{tpu_custom_call.1} parent=27 // pred_check_branch
          %581 = sbr.rel (%p579) target = $region68
        $region67: #{tpu_custom_call.1} parent=27 // pred_region
          %p582 = scmp.lt.s32.totalorder %s42, 1
          %s583 = scalar_select %p582, %s42, 1
          %s584 = scalar_lea.vmem %s11, %s583
        $region68: #{tpu_custom_call.1} parent=27 // pred_fallthru
          _
      $region28: #{tpu_custom_call.1} parent=5 // pred_fallthru
        _
      %p585 = scmp.le.s32.totalorder 1, %s34
      %p586 = scmp.lt.s32.totalorder %s34, 5
      %p587 = pnand %p585, %p586
      %p588 = pneg %p587
      // Predicated region
      $region69: #{tpu_custom_call.1} parent=5 // pred_check
        _
      $region70: #{tpu_custom_call.1} parent=5 // pred_check_branch
        %590 = sbr.rel (%p587) target = $region72
      $region71: #{tpu_custom_call.1} parent=5 // pred_region
        %s591 = ssub.s32 %s34, 1
        // Predicated region
        $region73: #{tpu_custom_call.1} parent=71 // pred_check
          %p592 = pneg %p67
        $region74: #{tpu_custom_call.1} parent=71 // pred_check_branch
          %594 = sbr.rel (%p592) target = $region76
        $region75: #{tpu_custom_call.1} parent=71 // pred_region
          %595 = dma.done [#allocation5], 128
        $region76: #{tpu_custom_call.1} parent=71 // pred_fallthru
          _
        %s596 = sand.u32 %s39, 1
        %s597 = scalar_lea.sflag [#allocation8], %s596
        %s598 = sand.u32 %s80, 1
        %s599 = scalar_lea.vmem [#allocation7], %s598
        // Predicated region
        $region77: #{tpu_custom_call.1} parent=71 // pred_check
          %p600 = pneg %p93
        $region78: #{tpu_custom_call.1} parent=71 // pred_check_branch
          %602 = sbr.rel (%p600) target = $region80
        $region79: #{tpu_custom_call.1} parent=71 // pred_region
          %603 = dma.done %s597, 16
        $region80: #{tpu_custom_call.1} parent=71 // pred_fallthru
          _
        %s604 = sand.u32 %s39, 1
        %s605 = scalar_lea.sflag [#allocation8], %s604
        %s606 = sand.u32 %s106, 1
        %s607 = scalar_lea.vmem [#allocation9], %s606
        // Predicated region
        $region81: #{tpu_custom_call.1} parent=71 // pred_check
          %p608 = pneg %p119
        $region82: #{tpu_custom_call.1} parent=71 // pred_check_branch
          %610 = sbr.rel (%p608) target = $region84
        $region83: #{tpu_custom_call.1} parent=71 // pred_region
          %611 = dma.done %s605, 16
        $region84: #{tpu_custom_call.1} parent=71 // pred_fallthru
          _
        %s612 = sand.u32 %s39, 1
        %s613 = scalar_lea.sflag [#allocation11], %s612
        %s614 = sand.u32 %s132, 1
        %s615 = smul.addr %s614, 192
        %s616 = scalar_lea.vmem [#allocation10], %s615
        // Predicated region
        $region85: #{tpu_custom_call.1} parent=71 // pred_check
          %p617 = pneg %p145
        $region86: #{tpu_custom_call.1} parent=71 // pred_check_branch
          %619 = sbr.rel (%p617) target = $region88
        $region87: #{tpu_custom_call.1} parent=71 // pred_region
          %620 = dma.done %s613, 3072
        $region88: #{tpu_custom_call.1} parent=71 // pred_fallthru
          _
        %s621 = sand.u32 %s39, 1
        %s622 = scalar_lea.sflag [#allocation11], %s621
        %s623 = sand.u32 %s184, 1
        %s624 = smul.addr %s623, 64
        %s625 = scalar_lea.vmem [#allocation12], %s624
        // Predicated region
        $region89: #{tpu_custom_call.1} parent=71 // pred_check
          %p626 = pneg %p197
        $region90: #{tpu_custom_call.1} parent=71 // pred_check_branch
          %628 = sbr.rel (%p626) target = $region92
        $region91: #{tpu_custom_call.1} parent=71 // pred_region
          %629 = dma.done %s622, 1024
        $region92: #{tpu_custom_call.1} parent=71 // pred_fallthru
          _
        %s630 = sand.u32 %s39, 1
        %s631 = scalar_lea.sflag [#allocation14], %s630
        %s632 = sand.u32 %s236, 1
        %s633 = smul.addr %s632, 128
        %s634 = scalar_lea.vmem [#allocation13], %s633
        // Predicated region
        $region93: #{tpu_custom_call.1} parent=71 // pred_check
          %p635 = pneg %p249
        $region94: #{tpu_custom_call.1} parent=71 // pred_check_branch
          %637 = sbr.rel (%p635) target = $region96
        $region95: #{tpu_custom_call.1} parent=71 // pred_region
          %638 = dma.done %s631, 2048
        $region96: #{tpu_custom_call.1} parent=71 // pred_fallthru
          _
        %s639 = sand.u32 %s39, 1
        %s640 = scalar_lea.sflag [#allocation14], %s639
        %s641 = sand.u32 %s288, 1
        %s642 = smul.addr %s641, 128
        %s643 = scalar_lea.vmem [#allocation15], %s642
        // Predicated region
        $region97: #{tpu_custom_call.1} parent=71 // pred_check
          %p644 = pneg %p301
        $region98: #{tpu_custom_call.1} parent=71 // pred_check_branch
          %646 = sbr.rel (%p644) target = $region100
        $region99: #{tpu_custom_call.1} parent=71 // pred_region
          %647 = dma.done %s640, 2048
        $region100: #{tpu_custom_call.1} parent=71 // pred_fallthru
          _
        // Predicated region
        $region101: #{tpu_custom_call.1} parent=71 // pred_check
          %p648 = pneg %p348
        $region102: #{tpu_custom_call.1} parent=71 // pred_check_branch
          %650 = sbr.rel (%p648) target = $region104
        $region103: #{tpu_custom_call.1} parent=71 // pred_region
          %651 = dma.done [#allocation17], 1024
        $region104: #{tpu_custom_call.1} parent=71 // pred_fallthru
          _
        %p652 = pneg %p67
        %p653 = pneg %p64
        %s654 = sand.u32 %s39, 1
        %s655 = scalar_lea.sflag [#allocation8], %s654
        %s656 = sand.u32 %s80, 1
        %s657 = scalar_lea.vmem [#allocation7], %s656
        %p658 = pneg %p93
        %p659 = pneg %p90
        %s660 = sand.u32 %s39, 1
        %s661 = scalar_lea.sflag [#allocation8], %s660
        %s662 = sand.u32 %s106, 1
        %s663 = scalar_lea.vmem [#allocation9], %s662
        %p664 = pneg %p119
        %p665 = pneg %p116
        %s666 = sand.u32 %s39, 1
        %s667 = scalar_lea.sflag [#allocation11], %s666
        %s668 = sand.u32 %s132, 1
        %s669 = smul.addr %s668, 192
        %s670 = scalar_lea.vmem [#allocation10], %s669
        %p671 = pneg %p145
        %p672 = pneg %p142
        %p673 = scmp.lt.s32.totalorder %s44, 1
        %s674 = scalar_select %p673, %s44, 1
        %s675 = smul.addr %s674, 3
        %s676 = scalar_lea.vmem %s5, %s675
        %p677 = pneg %p171
        %p678 = pneg %p168
        %s679 = sand.u32 %s39, 1
        %s680 = scalar_lea.sflag [#allocation11], %s679
        %s681 = sand.u32 %s184, 1
        %s682 = smul.addr %s681, 64
        %s683 = scalar_lea.vmem [#allocation12], %s682
        %p684 = pneg %p197
        %p685 = pneg %p194
        %p686 = scmp.lt.s32.totalorder %s44, 1
        %s687 = scalar_select %p686, %s44, 1
        %s688 = scalar_lea.vmem %s7, %s687
        %p689 = pneg %p223
        %p690 = pneg %p220
        %s691 = sand.u32 %s39, 1
        %s692 = scalar_lea.sflag [#allocation14], %s691
        %s693 = sand.u32 %s236, 1
        %s694 = smul.addr %s693, 128
        %s695 = scalar_lea.vmem [#allocation13], %s694
        %p696 = pneg %p249
        %p697 = pneg %p246
        %p698 = scmp.lt.s32.totalorder %s44, 1
        %s699 = scalar_select %p698, %s44, 1
        %s700 = smul.addr %s699, 2
        %s701 = scalar_lea.vmem %s9, %s700
        %p702 = pneg %p275
        %p703 = pneg %p272
        %s704 = sand.u32 %s39, 1
        %s705 = scalar_lea.sflag [#allocation14], %s704
        %s706 = sand.u32 %s288, 1
        %s707 = smul.addr %s706, 128
        %s708 = scalar_lea.vmem [#allocation15], %s707
        %p709 = pneg %p301
        %p710 = pneg %p298
        %p711 = scmp.lt.s32.totalorder %s44, 1
        %s712 = scalar_select %p711, %s44, 1
        %s713 = scalar_lea.vmem %s11, %s712
        %p714 = pneg %p327
        %p715 = pneg %p324
        %p716 = pneg %p348
        %p717 = pneg %p345
        %p718 = pneg %p369
        %p719 = pneg %p366
        %p720 = pneg %p395
        %p721 = pneg %p392
        %s722 = sand.u32 %s382, 1
        %s723 = scalar_lea.sflag [#allocation6], %s722
        %s724 = sand.u32 %s382, 1
        %s725 = smul.addr %s724, 8
        %s726 = scalar_lea.vmem [#allocation18], %s725
        %p727 = scmp.lt.s32.totalorder %s44, 1
        %s728 = scalar_select %p727, %s44, 1
        %s729 = smul.addr %s728, 3
        %s730 = scalar_lea.vmem %s5, %s729
        %p731 = scmp.lt.s32.totalorder %s44, 1
        %s732 = scalar_select %p731, %s44, 1
        %s733 = scalar_lea.vmem %s7, %s732
        %p734 = scmp.lt.s32.totalorder %s44, 1
        %s735 = scalar_select %p734, %s44, 1
        %s736 = smul.addr %s735, 2
        %s737 = scalar_lea.vmem %s9, %s736
        %p738 = scmp.lt.s32.totalorder %s44, 1
        %s739 = scalar_select %p738, %s44, 1
        %s740 = scalar_lea.vmem %s11, %s739
        %p742 = scmp.eq.s32.totalorder %s44, 0
        // Predicated region
        $region105: #{tpu_custom_call.1} parent=71 // pred_check
          %p743 = pneg %p742
        $region106: #{tpu_custom_call.1} parent=71 // pred_check_branch
          %745 = sbr.rel (%p743) target = $region108
        $region107: #{tpu_custom_call.1} parent=71 // pred_region
          %s746 = smul.u32 %s43, 8
          %s747 = smul.addr %s746, 16
          %s748 = scalar_lea.hbm %s0, %s747
          // Predicated region
          $region109: #{tpu_custom_call.1} parent=107 // pred_check
            _
          $region110: #{tpu_custom_call.1} parent=107 // pred_check_branch
            %750 = sbr.rel target = $region112
          $region111: #{tpu_custom_call.1} parent=107 // pred_region
            %751 = sst [smem:[#allocation21]] [#allocation20]
            %752 = sst [smem:[#allocation22]] [#allocation19]
          $region112: #{tpu_custom_call.1} parent=107 // pred_fallthru
            _
          %754 = shalt.err (0)
          %s756 = sshll.u32 [#allocation2], 4
          %s757 = int_to_ptr.vmem [resolvable:$true] %s756
          %759 = dma.hbm_to_vmem [thread:$0]  %s748, 128, %s757, [#allocation3]
          %s760 = smul.u32 8, 1
          %s761 = sshll.u32 %s760, 4
          %762 = dma.done [#allocation3], %s761
        $region108: #{tpu_custom_call.1} parent=71 // pred_fallthru
          _
        %v763 = vld [vmem:[#allocation2] sm:$0xff]
        %764 = vadd.xlane.f32.xlu0 %v763
        %v765 = vpop.xlane.xlu0 %764
        %v766 = vmul.f32 %v765, 0.015625
        %v767 = vmul.f32 %v763, %v763
        %768 = vadd.xlane.f32.xlu0 %v767
        %v769 = vpop.xlane.xlu0 %768
        %v770 = vmul.f32 %v769, 0.015625
        %v771 = vmul.f32 %v766, %v766
        %v772 = vsub.f32 %v770, %v771
        %v773 = vsub.f32 %v763, %v766
        %v774 = vadd.f32 %v772, 1e-05
        %v775 = vrsqrt.pop %v774
        %v776 = vmul.f32 %v773, %v775
        %v777 = vld [vmem:[%s599] sm:$0x1]
        %v779 = vlaneseq
        %v780 = vshrl.u32 %v779, 7
        %v781 = vsub.s32 0, %v780
        %v782 = vrot.slane %v777, %v781
        %v784 = vmul.f32 %v776, %v782
        %v785 = vld [vmem:[%s607] sm:$0x1]
        %v787 = vlaneseq
        %v788 = vshrl.u32 %v787, 7
        %v789 = vsub.s32 0, %v788
        %v790 = vrot.slane %v785, %v789
        %v792 = vadd.f32 %v784, %v790
        %v793 = vpack.c.bf16 %v792, %v792
        %v794 = vld [vmem:[%s616] sm:$0xff]
        %v795 = vld [vmem:[%s616 + $0x8] sm:$0xf]
        %v796 = vld [vmem:[%s616 + $0xc] sm:$0xff]
        %v797 = vld [vmem:[%s616 + $0x14] sm:$0xf]
        %v798 = vld [vmem:[%s616 + $0x18] sm:$0xff]
        %v799 = vld [vmem:[%s616 + $0x20] sm:$0xf]
        %v800 = vld [vmem:[%s616 + $0x24] sm:$0xff]
        %v801 = vld [vmem:[%s616 + $0x2c] sm:$0xf]
        %v802 = vld [vmem:[%s616 + $0x30] sm:$0xff]
        %v803 = vld [vmem:[%s616 + $0x38] sm:$0xf]
        %v804 = vld [vmem:[%s616 + $0x3c] sm:$0xff]
        %v805 = vld [vmem:[%s616 + $0x44] sm:$0xf]
        %v806 = vld [vmem:[%s616 + $0x48] sm:$0xff]
        %v807 = vld [vmem:[%s616 + $0x50] sm:$0xf]
        %v808 = vld [vmem:[%s616 + $0x54] sm:$0xff]
        %v809 = vld [vmem:[%s616 + $0x5c] sm:$0xf]
        %v810 = vld [vmem:[%s616 + $0x60] sm:$0xff]
        %v811 = vld [vmem:[%s616 + $0x68] sm:$0xf]
        %v812 = vld [vmem:[%s616 + $0x6c] sm:$0xff]
        %v813 = vld [vmem:[%s616 + $0x74] sm:$0xf]
        %v814 = vld [vmem:[%s616 + $0x78] sm:$0xff]
        %v815 = vld [vmem:[%s616 + $0x80] sm:$0xf]
        %v816 = vld [vmem:[%s616 + $0x84] sm:$0xff]
        %v817 = vld [vmem:[%s616 + $0x8c] sm:$0xf]
        %v818 = vld [vmem:[%s616 + $0x90] sm:$0xff]
        %v819 = vld [vmem:[%s616 + $0x98] sm:$0xf]
        %v820 = vld [vmem:[%s616 + $0x9c] sm:$0xff]
        %v821 = vld [vmem:[%s616 + $0xa4] sm:$0xf]
        %v822 = vld [vmem:[%s616 + $0xa8] sm:$0xff]
        %v823 = vld [vmem:[%s616 + $0xb0] sm:$0xf]
        %v824 = vld [vmem:[%s616 + $0xb4] sm:$0xff]
        %v825 = vld [vmem:[%s616 + $0xbc] sm:$0xf]
        %v826 = vld [vmem:[%s730] sm:$0x7]
        %v828 = vlaneseq
        %v829 = vshrl.u32 %v828, 7
        %v830 = vsub.s32 0, %v829
        %v831 = vrot.slane %v826, %v830
        %v832 = vlaneseq
        %v833 = vshrl.u32 %v832, 7
        %v834 = vsub.s32 1, %v833
        %v835 = vrot.slane %v826, %v834
        %v836 = vlaneseq
        %v837 = vshrl.u32 %v836, 7
        %v838 = vsub.s32 2, %v837
        %v839 = vrot.slane %v826, %v838
        %v875 = vunpack.c.l.b16 %v794
        %v876 = vunpack.c.h.b16 %v794
        %v877 = vunpack.c.l.b16 %v795
        %v878 = vunpack.c.l.b16 %v796
        %v879 = vunpack.c.h.b16 %v796
        %v880 = vunpack.c.l.b16 %v797
        %v881 = vunpack.c.l.b16 %v798
        %v882 = vunpack.c.h.b16 %v798
        %v883 = vunpack.c.l.b16 %v799
        %v884 = vunpack.c.l.b16 %v800
        %v885 = vunpack.c.h.b16 %v800
        %v886 = vunpack.c.l.b16 %v801
        %v887 = vunpack.c.l.b16 %v802
        %v888 = vunpack.c.h.b16 %v802
        %v889 = vunpack.c.l.b16 %v803
        %v890 = vunpack.c.l.b16 %v804
        %v891 = vunpack.c.h.b16 %v804
        %v892 = vunpack.c.l.b16 %v805
        %v893 = vunpack.c.l.b16 %v806
        %v894 = vunpack.c.h.b16 %v806
        %v895 = vunpack.c.l.b16 %v807
        %v896 = vunpack.c.l.b16 %v808
        %v897 = vunpack.c.h.b16 %v808
        %v898 = vunpack.c.l.b16 %v809
        %v899 = vunpack.c.l.b16 %v810
        %v900 = vunpack.c.h.b16 %v810
        %v901 = vunpack.c.l.b16 %v811
        %v902 = vunpack.c.l.b16 %v812
        %v903 = vunpack.c.h.b16 %v812
        %v904 = vunpack.c.l.b16 %v813
        %v905 = vunpack.c.l.b16 %v814
        %v906 = vunpack.c.h.b16 %v814
        %v907 = vunpack.c.l.b16 %v815
        %v908 = vunpack.c.l.b16 %v816
        %v909 = vunpack.c.h.b16 %v816
        %v910 = vunpack.c.l.b16 %v817
        %v911 = vunpack.c.l.b16 %v818
        %v912 = vunpack.c.h.b16 %v818
        %v913 = vunpack.c.l.b16 %v819
        %v914 = vunpack.c.l.b16 %v820
        %v915 = vunpack.c.h.b16 %v820
        %v916 = vunpack.c.l.b16 %v821
        %v917 = vunpack.c.l.b16 %v822
        %v918 = vunpack.c.h.b16 %v822
        %v919 = vunpack.c.l.b16 %v823
        %v920 = vunpack.c.l.b16 %v824
        %v921 = vunpack.c.h.b16 %v824
        %v922 = vunpack.c.l.b16 %v825
        %v923 = vpack.c.b16 %v878, %v875
        %v924 = vpack.c.b16 %v879, %v876
        %v925 = vpack.c.b16 %v880, %v877
        %v926 = vpack.c.b16 %v884, %v881
        %v927 = vpack.c.b16 %v885, %v882
        %v928 = vpack.c.b16 %v886, %v883
        %v929 = vpack.c.b16 %v890, %v887
        %v930 = vpack.c.b16 %v891, %v888
        %v931 = vpack.c.b16 %v892, %v889
        %v932 = vpack.c.b16 %v896, %v893
        %v933 = vpack.c.b16 %v897, %v894
        %v934 = vpack.c.b16 %v898, %v895
        %v935 = vpack.c.b16 %v902, %v899
        %v936 = vpack.c.b16 %v903, %v900
        %v937 = vpack.c.b16 %v904, %v901
        %v938 = vpack.c.b16 %v908, %v905
        %v939 = vpack.c.b16 %v909, %v906
        %v940 = vpack.c.b16 %v910, %v907
        %v941 = vpack.c.b16 %v914, %v911
        %v942 = vpack.c.b16 %v915, %v912
        %v943 = vpack.c.b16 %v916, %v913
        %v944 = vpack.c.b16 %v920, %v917
        %v945 = vpack.c.b16 %v921, %v918
        %v946 = vpack.c.b16 %v922, %v919
        %971 = vmatprep.subr.bf16.mxu0 %v945
        %972 = vmatpush1.bf16.msra.mxu0 %v944
        %973 = vmatprep.subr.bf16.mxu0 %v942
        %974 = vmatpush1.bf16.msra.mxu0 %v941
        %975 = vmatprep.subr.bf16.mxu0 %v939
        %976 = vmatpush1.bf16.msra.mxu0 %v938
        %977 = vmatprep.subr.bf16.mxu0 %v936
        %978 = vmatpush1.bf16.msra.mxu0 %v935
        %979 = vmatprep.subr.bf16.mxu0 %v933
        %980 = vmatpush1.bf16.msra.mxu0 %v932
        %981 = vmatprep.subr.bf16.mxu0 %v930
        %982 = vmatpush1.bf16.msra.mxu0 %v929
        %983 = vmatprep.subr.bf16.mxu0 %v927
        %984 = vmatpush1.bf16.msra.mxu0 %v926
        %985 = vmatprep.subr.bf16.mxu0 %v924
        %986 = vmatpush1.bf16.msra.mxu0 %v923
        %987 = vmatprep.subr.bf16.mxu0 0
        %988 = vmatpush2.bf16.msra.mxu0 0
        %989 = vmatprep.subr.bf16.mxu0 0
        %990 = vmatpush2.bf16.msra.mxu0 0
        %991 = vmatprep.subr.bf16.mxu0 0
        %992 = vmatpush2.bf16.msra.mxu0 0
        %993 = vmatprep.subr.bf16.mxu0 0
        %994 = vmatpush2.bf16.msra.mxu0 0
        %995 = vmatprep.subr.bf16.mxu0 0
        %996 = vmatpush2.bf16.msra.mxu0 0
        %997 = vmatprep.subr.bf16.mxu0 0
        %998 = vmatpush2.bf16.msra.mxu0 0
        %999 = vmatprep.subr.bf16.mxu0 0
        %1000 = vmatpush2.bf16.msra.mxu0 0
        %1001 = vmatprep.subr.bf16.mxu0 0
        %1002 = vmatpush2.bf16.msra.mxu0 0
        %1003 = vmatprep.mubr.bf16.mxu0 0
        %1004 = vmatmul.mubr.bf16.gmra.mxu0 %v793
        %v1005 = vpop.f32.mrf.mxu0
        %v1006 = vadd.f32 %v831, %v1005
        %v1007 = vpop.f32.mrf.mxu0
        %v1008 = vadd.f32 %v835, %v1007
        %v1009 = vpop.f32.mrf.mxu0
        %v1010 = vpop.f32.mrf.mxu0
        %1011 = vdwg.mxu0
        %1012 = vmatprep.subr.bf16.mxu0 0
        %1013 = vmatpush1.bf16.msra.mxu0 %v946
        %1014 = vmatprep.subr.bf16.mxu0 0
        %1015 = vmatpush1.bf16.msra.mxu0 %v943
        %1016 = vmatprep.subr.bf16.mxu0 0
        %1017 = vmatpush1.bf16.msra.mxu0 %v940
        %1018 = vmatprep.subr.bf16.mxu0 0
        %1019 = vmatpush1.bf16.msra.mxu0 %v937
        %1020 = vmatprep.subr.bf16.mxu0 0
        %1021 = vmatpush1.bf16.msra.mxu0 %v934
        %1022 = vmatprep.subr.bf16.mxu0 0
        %1023 = vmatpush1.bf16.msra.mxu0 %v931
        %1024 = vmatprep.subr.bf16.mxu0 0
        %1025 = vmatpush1.bf16.msra.mxu0 %v928
        %1026 = vmatprep.subr.bf16.mxu0 0
        %1027 = vmatpush1.bf16.msra.mxu0 %v925
        %1028 = vmatprep.subr.bf16.mxu0 0
        %1029 = vmatpush2.bf16.msra.mxu0 0
        %1030 = vmatprep.subr.bf16.mxu0 0
        %1031 = vmatpush2.bf16.msra.mxu0 0
        %1032 = vmatprep.subr.bf16.mxu0 0
        %1033 = vmatpush2.bf16.msra.mxu0 0
        %1034 = vmatprep.subr.bf16.mxu0 0
        %1035 = vmatpush2.bf16.msra.mxu0 0
        %1036 = vmatprep.subr.bf16.mxu0 0
        %1037 = vmatpush2.bf16.msra.mxu0 0
        %1038 = vmatprep.subr.bf16.mxu0 0
        %1039 = vmatpush2.bf16.msra.mxu0 0
        %1040 = vmatprep.subr.bf16.mxu0 0
        %1041 = vmatpush2.bf16.msra.mxu0 0
        %1042 = vmatprep.subr.bf16.mxu0 0
        %1043 = vmatpush2.bf16.msra.mxu0 0
        %1044 = vmatprep.mubr.bf16.mxu0 0
        %1045 = vmatmul.mubr.bf16.gmra.mxu0 %v793
        %v1046 = vpop.f32.mrf.mxu0
        %v1047 = vadd.f32 %v839, %v1046
        %v1048 = vpop.f32.mrf.mxu0
        %v1049 = vpop.f32.mrf.mxu0
        %v1050 = vpop.f32.mrf.mxu0
        %1051 = vdwg.mxu0
        %1053 = vrot.lane.b32.xlu0 %v1006, 96
        %v1054 = vpop.permute.xlu0 %1053
        %1056 = vrot.lane.b32.xlu0 %v1006, 64
        %v1057 = vpop.permute.xlu0 %1056
        %1059 = vrot.lane.b32.xlu0 %v1006, 32
        %v1060 = vpop.permute.xlu0 %1059
        %v1062 = vcombine.low %v1006, %v1057
        %v1063 = vcombine.high %v1006, %v1057
        %v1065 = vunpack.c.l.s4 1983009808
        %v1066 = vunpack.c.0.s8 %v1065
        %v1067 = vlaneseq
        %v1068 = vshrl.u32 %v1067, 7
        %v1069 = vsub.s32 %v1066, %v1068
        %v1070 = vrot.slane %v1062, %v1069
        %v1072 = vunpack.c.l.s4 1983009808
        %v1073 = vunpack.c.0.s8 %v1072
        %v1074 = vlaneseq
        %v1075 = vshrl.u32 %v1074, 7
        %v1076 = vsub.s32 %v1073, %v1075
        %v1077 = vrot.slane %v1063, %v1076
        %v1078 = vcombine.low %v1054, %v1060
        %v1079 = vcombine.high %v1054, %v1060
        %v1081 = vunpack.c.l.s4 1983009808
        %v1082 = vunpack.c.0.s8 %v1081
        %v1083 = vlaneseq
        %v1084 = vshrl.u32 %v1083, 7
        %v1085 = vsub.s32 %v1082, %v1084
        %v1086 = vrot.slane %v1078, %v1085
        %v1088 = vunpack.c.l.s4 1983009808
        %v1089 = vunpack.c.0.s8 %v1088
        %v1090 = vlaneseq
        %v1091 = vshrl.u32 %v1090, 7
        %v1092 = vsub.s32 %v1089, %v1091
        %v1093 = vrot.slane %v1079, %v1092
        %v1094 = vcombine.low %v1070, %v1086
        %v1095 = vcombine.high %v1070, %v1086
        %v1097 = vunpack.c.l.s4 1934713408
        %v1098 = vunpack.c.0.s8 %v1097
        %v1099 = vlaneseq
        %v1100 = vshrl.u32 %v1099, 7
        %v1101 = vsub.s32 %v1098, %v1100
        %v1102 = vrot.slane %v1094, %v1101
        %v1104 = vunpack.c.l.s4 1934713408
        %v1105 = vunpack.c.0.s8 %v1104
        %v1106 = vlaneseq
        %v1107 = vshrl.u32 %v1106, 7
        %v1108 = vsub.s32 %v1105, %v1107
        %v1109 = vrot.slane %v1095, %v1108
        %v1110 = vcombine.low %v1077, %v1093
        %v1111 = vcombine.high %v1077, %v1093
        %v1113 = vunpack.c.l.s4 1934713408
        %v1114 = vunpack.c.0.s8 %v1113
        %v1115 = vlaneseq
        %v1116 = vshrl.u32 %v1115, 7
        %v1117 = vsub.s32 %v1114, %v1116
        %v1118 = vrot.slane %v1110, %v1117
        %v1120 = vunpack.c.l.s4 1934713408
        %v1121 = vunpack.c.0.s8 %v1120
        %v1122 = vlaneseq
        %v1123 = vshrl.u32 %v1122, 7
        %v1124 = vsub.s32 %v1121, %v1123
        %v1125 = vrot.slane %v1111, %v1124
        %v1126 = vcombine.high %v1102, 0.0
        %v1127 = vcombine.high %v1109, 0.0
        %v1128 = vcombine.high %v1118, 0.0
        %v1129 = vcombine.high %v1125, 0.0
        %v1130 = vcombine.low %v1102, %v1109
        %v1132 = vunpack.c.l.s4 1983009808
        %v1133 = vunpack.c.0.s8 %v1132
        %v1134 = vlaneseq
        %v1135 = vshrl.u32 %v1134, 7
        %v1136 = vsub.s32 %v1133, %v1135
        %v1137 = vrot.slane %v1130, %v1136
        %v1138 = vcombine.low %v1126, %v1127
        %v1140 = vunpack.c.l.s4 1983009808
        %v1141 = vunpack.c.0.s8 %v1140
        %v1142 = vlaneseq
        %v1143 = vshrl.u32 %v1142, 7
        %v1144 = vsub.s32 %v1141, %v1143
        %v1145 = vrot.slane %v1138, %v1144
        %v1146 = vcombine.low %v1118, %v1125
        %v1148 = vunpack.c.l.s4 1983009808
        %v1149 = vunpack.c.0.s8 %v1148
        %v1150 = vlaneseq
        %v1151 = vshrl.u32 %v1150, 7
        %v1152 = vsub.s32 %v1149, %v1151
        %v1153 = vrot.slane %v1146, %v1152
        %v1154 = vcombine.low %v1128, %v1129
        %v1156 = vunpack.c.l.s4 1983009808
        %v1157 = vunpack.c.0.s8 %v1156
        %v1158 = vlaneseq
        %v1159 = vshrl.u32 %v1158, 7
        %v1160 = vsub.s32 %v1157, %v1159
        %v1161 = vrot.slane %v1154, %v1160
        %v1162 = vcombine.low %v1137, %v1145
        %v1163 = vcombine.high %v1137, %v1145
        %v1165 = vunpack.c.l.s4 1934713408
        %v1166 = vunpack.c.0.s8 %v1165
        %v1167 = vlaneseq
        %v1168 = vshrl.u32 %v1167, 7
        %v1169 = vsub.s32 %v1166, %v1168
        %v1170 = vrot.slane %v1162, %v1169
        %v1172 = vunpack.c.l.s4 1934713408
        %v1173 = vunpack.c.0.s8 %v1172
        %v1174 = vlaneseq
        %v1175 = vshrl.u32 %v1174, 7
        %v1176 = vsub.s32 %v1173, %v1175
        %v1177 = vrot.slane %v1163, %v1176
        %v1178 = vcombine.low %v1153, %v1161
        %v1179 = vcombine.high %v1153, %v1161
        %v1181 = vunpack.c.l.s4 1934713408
        %v1182 = vunpack.c.0.s8 %v1181
        %v1183 = vlaneseq
        %v1184 = vshrl.u32 %v1183, 7
        %v1185 = vsub.s32 %v1182, %v1184
        %v1186 = vrot.slane %v1178, %v1185
        %v1188 = vunpack.c.l.s4 1934713408
        %v1189 = vunpack.c.0.s8 %v1188
        %v1190 = vlaneseq
        %v1191 = vshrl.u32 %v1190, 7
        %v1192 = vsub.s32 %v1189, %v1191
        %v1193 = vrot.slane %v1179, %v1192
        %v1194 = vcombine.low %v1170, %v1186
        %v1195 = vcombine.high %v1170, %v1186
        %v1196 = vcombine.low %v1177, %v1193
        %v1197 = vcombine.high %v1177, %v1193
        %v1198 = vpack.c.bf16 %v1194, %v1194
        %v1199 = vpack.c.bf16 %v1195, %v1195
        %v1200 = vpack.c.bf16 %v1196, %v1196
        %v1201 = vpack.c.bf16 %v1197, %v1197
        %1203 = vrot.lane.b32.xlu0 %v1008, 96
        %v1204 = vpop.permute.xlu0 %1203
        %1206 = vrot.lane.b32.xlu0 %v1008, 64
        %v1207 = vpop.permute.xlu0 %1206
        %1209 = vrot.lane.b32.xlu0 %v1008, 32
        %v1210 = vpop.permute.xlu0 %1209
        %v1212 = vcombine.low %v1008, %v1207
        %v1213 = vcombine.high %v1008, %v1207
        %v1215 = vunpack.c.l.s4 1983009808
        %v1216 = vunpack.c.0.s8 %v1215
        %v1217 = vlaneseq
        %v1218 = vshrl.u32 %v1217, 7
        %v1219 = vsub.s32 %v1216, %v1218
        %v1220 = vrot.slane %v1212, %v1219
        %v1222 = vunpack.c.l.s4 1983009808
        %v1223 = vunpack.c.0.s8 %v1222
        %v1224 = vlaneseq
        %v1225 = vshrl.u32 %v1224, 7
        %v1226 = vsub.s32 %v1223, %v1225
        %v1227 = vrot.slane %v1213, %v1226
        %v1228 = vcombine.low %v1204, %v1210
        %v1229 = vcombine.high %v1204, %v1210
        %v1231 = vunpack.c.l.s4 1983009808
        %v1232 = vunpack.c.0.s8 %v1231
        %v1233 = vlaneseq
        %v1234 = vshrl.u32 %v1233, 7
        %v1235 = vsub.s32 %v1232, %v1234
        %v1236 = vrot.slane %v1228, %v1235
        %v1238 = vunpack.c.l.s4 1983009808
        %v1239 = vunpack.c.0.s8 %v1238
        %v1240 = vlaneseq
        %v1241 = vshrl.u32 %v1240, 7
        %v1242 = vsub.s32 %v1239, %v1241
        %v1243 = vrot.slane %v1229, %v1242
        %v1244 = vcombine.low %v1220, %v1236
        %v1245 = vcombine.high %v1220, %v1236
        %v1247 = vunpack.c.l.s4 1934713408
        %v1248 = vunpack.c.0.s8 %v1247
        %v1249 = vlaneseq
        %v1250 = vshrl.u32 %v1249, 7
        %v1251 = vsub.s32 %v1248, %v1250
        %v1252 = vrot.slane %v1244, %v1251
        %v1254 = vunpack.c.l.s4 1934713408
        %v1255 = vunpack.c.0.s8 %v1254
        %v1256 = vlaneseq
        %v1257 = vshrl.u32 %v1256, 7
        %v1258 = vsub.s32 %v1255, %v1257
        %v1259 = vrot.slane %v1245, %v1258
        %v1260 = vcombine.low %v1227, %v1243
        %v1261 = vcombine.high %v1227, %v1243
        %v1263 = vunpack.c.l.s4 1934713408
        %v1264 = vunpack.c.0.s8 %v1263
        %v1265 = vlaneseq
        %v1266 = vshrl.u32 %v1265, 7
        %v1267 = vsub.s32 %v1264, %v1266
        %v1268 = vrot.slane %v1260, %v1267
        %v1270 = vunpack.c.l.s4 1934713408
        %v1271 = vunpack.c.0.s8 %v1270
        %v1272 = vlaneseq
        %v1273 = vshrl.u32 %v1272, 7
        %v1274 = vsub.s32 %v1271, %v1273
        %v1275 = vrot.slane %v1261, %v1274
        %v1276 = vcombine.high %v1252, 0.0
        %v1277 = vcombine.high %v1259, 0.0
        %v1278 = vcombine.high %v1268, 0.0
        %v1279 = vcombine.high %v1275, 0.0
        %v1280 = vcombine.low %v1252, %v1259
        %v1282 = vunpack.c.l.s4 1983009808
        %v1283 = vunpack.c.0.s8 %v1282
        %v1284 = vlaneseq
        %v1285 = vshrl.u32 %v1284, 7
        %v1286 = vsub.s32 %v1283, %v1285
        %v1287 = vrot.slane %v1280, %v1286
        %v1288 = vcombine.low %v1276, %v1277
        %v1290 = vunpack.c.l.s4 1983009808
        %v1291 = vunpack.c.0.s8 %v1290
        %v1292 = vlaneseq
        %v1293 = vshrl.u32 %v1292, 7
        %v1294 = vsub.s32 %v1291, %v1293
        %v1295 = vrot.slane %v1288, %v1294
        %v1296 = vcombine.low %v1268, %v1275
        %v1298 = vunpack.c.l.s4 1983009808
        %v1299 = vunpack.c.0.s8 %v1298
        %v1300 = vlaneseq
        %v1301 = vshrl.u32 %v1300, 7
        %v1302 = vsub.s32 %v1299, %v1301
        %v1303 = vrot.slane %v1296, %v1302
        %v1304 = vcombine.low %v1278, %v1279
        %v1306 = vunpack.c.l.s4 1983009808
        %v1307 = vunpack.c.0.s8 %v1306
        %v1308 = vlaneseq
        %v1309 = vshrl.u32 %v1308, 7
        %v1310 = vsub.s32 %v1307, %v1309
        %v1311 = vrot.slane %v1304, %v1310
        %v1312 = vcombine.low %v1287, %v1295
        %v1313 = vcombine.high %v1287, %v1295
        %v1315 = vunpack.c.l.s4 1934713408
        %v1316 = vunpack.c.0.s8 %v1315
        %v1317 = vlaneseq
        %v1318 = vshrl.u32 %v1317, 7
        %v1319 = vsub.s32 %v1316, %v1318
        %v1320 = vrot.slane %v1312, %v1319
        %v1322 = vunpack.c.l.s4 1934713408
        %v1323 = vunpack.c.0.s8 %v1322
        %v1324 = vlaneseq
        %v1325 = vshrl.u32 %v1324, 7
        %v1326 = vsub.s32 %v1323, %v1325
        %v1327 = vrot.slane %v1313, %v1326
        %v1328 = vcombine.low %v1303, %v1311
        %v1329 = vcombine.high %v1303, %v1311
        %v1331 = vunpack.c.l.s4 1934713408
        %v1332 = vunpack.c.0.s8 %v1331
        %v1333 = vlaneseq
        %v1334 = vshrl.u32 %v1333, 7
        %v1335 = vsub.s32 %v1332, %v1334
        %v1336 = vrot.slane %v1328, %v1335
        %v1338 = vunpack.c.l.s4 1934713408
        %v1339 = vunpack.c.0.s8 %v1338
        %v1340 = vlaneseq
        %v1341 = vshrl.u32 %v1340, 7
        %v1342 = vsub.s32 %v1339, %v1341
        %v1343 = vrot.slane %v1329, %v1342
        %v1344 = vcombine.low %v1320, %v1336
        %v1345 = vcombine.high %v1320, %v1336
        %v1346 = vcombine.low %v1327, %v1343
        %v1347 = vcombine.high %v1327, %v1343
        %v1348 = vpack.c.bf16 %v1344, %v1344
        %v1349 = vpack.c.bf16 %v1345, %v1345
        %v1350 = vpack.c.bf16 %v1346, %v1346
        %v1351 = vpack.c.bf16 %v1347, %v1347
        %1353 = vrot.lane.b32.xlu0 %v1047, 96
        %v1354 = vpop.permute.xlu0 %1353
        %1356 = vrot.lane.b32.xlu0 %v1047, 64
        %v1357 = vpop.permute.xlu0 %1356
        %1359 = vrot.lane.b32.xlu0 %v1047, 32
        %v1360 = vpop.permute.xlu0 %1359
        %v1362 = vcombine.low %v1047, %v1357
        %v1363 = vcombine.high %v1047, %v1357
        %v1365 = vunpack.c.l.s4 1983009808
        %v1366 = vunpack.c.0.s8 %v1365
        %v1367 = vlaneseq
        %v1368 = vshrl.u32 %v1367, 7
        %v1369 = vsub.s32 %v1366, %v1368
        %v1370 = vrot.slane %v1362, %v1369
        %v1372 = vunpack.c.l.s4 1983009808
        %v1373 = vunpack.c.0.s8 %v1372
        %v1374 = vlaneseq
        %v1375 = vshrl.u32 %v1374, 7
        %v1376 = vsub.s32 %v1373, %v1375
        %v1377 = vrot.slane %v1363, %v1376
        %v1378 = vcombine.low %v1354, %v1360
        %v1379 = vcombine.high %v1354, %v1360
        %v1381 = vunpack.c.l.s4 1983009808
        %v1382 = vunpack.c.0.s8 %v1381
        %v1383 = vlaneseq
        %v1384 = vshrl.u32 %v1383, 7
        %v1385 = vsub.s32 %v1382, %v1384
        %v1386 = vrot.slane %v1378, %v1385
        %v1388 = vunpack.c.l.s4 1983009808
        %v1389 = vunpack.c.0.s8 %v1388
        %v1390 = vlaneseq
        %v1391 = vshrl.u32 %v1390, 7
        %v1392 = vsub.s32 %v1389, %v1391
        %v1393 = vrot.slane %v1379, %v1392
        %v1394 = vcombine.low %v1370, %v1386
        %v1395 = vcombine.high %v1370, %v1386
        %v1397 = vunpack.c.l.s4 1934713408
        %v1398 = vunpack.c.0.s8 %v1397
        %v1399 = vlaneseq
        %v1400 = vshrl.u32 %v1399, 7
        %v1401 = vsub.s32 %v1398, %v1400
        %v1402 = vrot.slane %v1394, %v1401
        %v1404 = vunpack.c.l.s4 1934713408
        %v1405 = vunpack.c.0.s8 %v1404
        %v1406 = vlaneseq
        %v1407 = vshrl.u32 %v1406, 7
        %v1408 = vsub.s32 %v1405, %v1407
        %v1409 = vrot.slane %v1395, %v1408
        %v1410 = vcombine.low %v1377, %v1393
        %v1411 = vcombine.high %v1377, %v1393
        %v1413 = vunpack.c.l.s4 1934713408
        %v1414 = vunpack.c.0.s8 %v1413
        %v1415 = vlaneseq
        %v1416 = vshrl.u32 %v1415, 7
        %v1417 = vsub.s32 %v1414, %v1416
        %v1418 = vrot.slane %v1410, %v1417
        %v1420 = vunpack.c.l.s4 1934713408
        %v1421 = vunpack.c.0.s8 %v1420
        %v1422 = vlaneseq
        %v1423 = vshrl.u32 %v1422, 7
        %v1424 = vsub.s32 %v1421, %v1423
        %v1425 = vrot.slane %v1411, %v1424
        %v1426 = vcombine.high %v1402, 0.0
        %v1427 = vcombine.high %v1409, 0.0
        %v1428 = vcombine.high %v1418, 0.0
        %v1429 = vcombine.high %v1425, 0.0
        %v1430 = vcombine.low %v1402, %v1409
        %v1432 = vunpack.c.l.s4 1983009808
        %v1433 = vunpack.c.0.s8 %v1432
        %v1434 = vlaneseq
        %v1435 = vshrl.u32 %v1434, 7
        %v1436 = vsub.s32 %v1433, %v1435
        %v1437 = vrot.slane %v1430, %v1436
        %v1438 = vcombine.low %v1426, %v1427
        %v1440 = vunpack.c.l.s4 1983009808
        %v1441 = vunpack.c.0.s8 %v1440
        %v1442 = vlaneseq
        %v1443 = vshrl.u32 %v1442, 7
        %v1444 = vsub.s32 %v1441, %v1443
        %v1445 = vrot.slane %v1438, %v1444
        %v1446 = vcombine.low %v1418, %v1425
        %v1448 = vunpack.c.l.s4 1983009808
        %v1449 = vunpack.c.0.s8 %v1448
        %v1450 = vlaneseq
        %v1451 = vshrl.u32 %v1450, 7
        %v1452 = vsub.s32 %v1449, %v1451
        %v1453 = vrot.slane %v1446, %v1452
        %v1454 = vcombine.low %v1428, %v1429
        %v1456 = vunpack.c.l.s4 1983009808
        %v1457 = vunpack.c.0.s8 %v1456
        %v1458 = vlaneseq
        %v1459 = vshrl.u32 %v1458, 7
        %v1460 = vsub.s32 %v1457, %v1459
        %v1461 = vrot.slane %v1454, %v1460
        %v1462 = vcombine.low %v1437, %v1445
        %v1463 = vcombine.high %v1437, %v1445
        %v1465 = vunpack.c.l.s4 1934713408
        %v1466 = vunpack.c.0.s8 %v1465
        %v1467 = vlaneseq
        %v1468 = vshrl.u32 %v1467, 7
        %v1469 = vsub.s32 %v1466, %v1468
        %v1470 = vrot.slane %v1462, %v1469
        %v1472 = vunpack.c.l.s4 1934713408
        %v1473 = vunpack.c.0.s8 %v1472
        %v1474 = vlaneseq
        %v1475 = vshrl.u32 %v1474, 7
        %v1476 = vsub.s32 %v1473, %v1475
        %v1477 = vrot.slane %v1463, %v1476
        %v1478 = vcombine.low %v1453, %v1461
        %v1479 = vcombine.high %v1453, %v1461
        %v1481 = vunpack.c.l.s4 1934713408
        %v1482 = vunpack.c.0.s8 %v1481
        %v1483 = vlaneseq
        %v1484 = vshrl.u32 %v1483, 7
        %v1485 = vsub.s32 %v1482, %v1484
        %v1486 = vrot.slane %v1478, %v1485
        %v1488 = vunpack.c.l.s4 1934713408
        %v1489 = vunpack.c.0.s8 %v1488
        %v1490 = vlaneseq
        %v1491 = vshrl.u32 %v1490, 7
        %v1492 = vsub.s32 %v1489, %v1491
        %v1493 = vrot.slane %v1479, %v1492
        %v1494 = vcombine.low %v1470, %v1486
        %v1495 = vcombine.high %v1470, %v1486
        %v1496 = vcombine.low %v1477, %v1493
        %v1497 = vcombine.high %v1477, %v1493
        %v1498 = vpack.c.bf16 %v1494, %v1494
        %v1499 = vpack.c.bf16 %v1495, %v1495
        %v1500 = vpack.c.bf16 %v1496, %v1496
        %v1501 = vpack.c.bf16 %v1497, %v1497
        %vm1502 = vcmask 261120
        %v1504 = vsel %vm1502, %v1198, 0
        %v1507 = vsel %vm1502, %v1348, 0
        %1509 = vmatprep.subr.bf16.mxu0 0
        %1510 = vmatpush1.bf16.xpose.msra.mxu0 0
        %1511 = vmatprep.subr.bf16.mxu0 0
        %1512 = vmatpush1.bf16.xpose.msra.mxu0 0
        %1513 = vmatprep.subr.bf16.mxu0 0
        %1514 = vmatpush1.bf16.xpose.msra.mxu0 0
        %1515 = vmatprep.subr.bf16.mxu0 0
        %1516 = vmatpush1.bf16.xpose.msra.mxu0 0
        %1517 = vmatprep.subr.bf16.mxu0 0
        %1518 = vmatpush1.bf16.xpose.msra.mxu0 0
        %1519 = vmatprep.subr.bf16.mxu0 0
        %1520 = vmatpush1.bf16.xpose.msra.mxu0 0
        %1521 = vmatprep.subr.bf16.mxu0 0
        %1522 = vmatpush1.bf16.xpose.msra.mxu0 0
        %1523 = vmatprep.subr.bf16.mxu0 0
        %1524 = vmatpush1.bf16.xpose.msra.mxu0 %v1507
        %1525 = vmatprep.subr.bf16.mxu0 0
        %1526 = vmatpush2.bf16.xpose.msra.mxu0 0
        %1527 = vmatprep.subr.bf16.mxu0 0
        %1528 = vmatpush2.bf16.xpose.msra.mxu0 0
        %1529 = vmatprep.subr.bf16.mxu0 0
        %1530 = vmatpush2.bf16.xpose.msra.mxu0 0
        %1531 = vmatprep.subr.bf16.mxu0 0
        %1532 = vmatpush2.bf16.xpose.msra.mxu0 0
        %1533 = vmatprep.subr.bf16.mxu0 0
        %1534 = vmatpush2.bf16.xpose.msra.mxu0 0
        %1535 = vmatprep.subr.bf16.mxu0 0
        %1536 = vmatpush2.bf16.xpose.msra.mxu0 0
        %1537 = vmatprep.subr.bf16.mxu0 0
        %1538 = vmatpush2.bf16.xpose.msra.mxu0 0
        %1539 = vmatprep.subr.bf16.mxu0 0
        %1540 = vmatpush2.bf16.xpose.msra.mxu0 0
        %1541 = vmatprep.mubr.bf16.mxu0 0
        %1542 = vmatmul.mubr.bf16.gmra.mxu0 %v1504
        %v1543 = vpop.f32.mrf.mxu0
        %v1544 = vadd.f32 0.0, %v1543
        %v1545 = vpop.f32.mrf.mxu0
        %v1546 = vpop.f32.mrf.mxu0
        %v1547 = vpop.f32.mrf.mxu0
        %1548 = vdwg.mxu0
        %v1550 = vsel %vm1502, %v1199, 0
        %v1553 = vsel %vm1502, %v1349, 0
        %1555 = vmatprep.subr.bf16.mxu0 0
        %1556 = vmatpush1.bf16.xpose.msra.mxu0 0
        %1557 = vmatprep.subr.bf16.mxu0 0
        %1558 = vmatpush1.bf16.xpose.msra.mxu0 0
        %1559 = vmatprep.subr.bf16.mxu0 0
        %1560 = vmatpush1.bf16.xpose.msra.mxu0 0
        %1561 = vmatprep.subr.bf16.mxu0 0
        %1562 = vmatpush1.bf16.xpose.msra.mxu0 0
        %1563 = vmatprep.subr.bf16.mxu0 0
        %1564 = vmatpush1.bf16.xpose.msra.mxu0 0
        %1565 = vmatprep.subr.bf16.mxu0 0
        %1566 = vmatpush1.bf16.xpose.msra.mxu0 0
        %1567 = vmatprep.subr.bf16.mxu0 0
        %1568 = vmatpush1.bf16.xpose.msra.mxu0 0
        %1569 = vmatprep.subr.bf16.mxu0 0
        %1570 = vmatpush1.bf16.xpose.msra.mxu0 %v1553
        %1571 = vmatprep.subr.bf16.mxu0 0
        %1572 = vmatpush2.bf16.xpose.msra.mxu0 0
        %1573 = vmatprep.subr.bf16.mxu0 0
        %1574 = vmatpush2.bf16.xpose.msra.mxu0 0
        %1575 = vmatprep.subr.bf16.mxu0 0
        %1576 = vmatpush2.bf16.xpose.msra.mxu0 0
        %1577 = vmatprep.subr.bf16.mxu0 0
        %1578 = vmatpush2.bf16.xpose.msra.mxu0 0
        %1579 = vmatprep.subr.bf16.mxu0 0
        %1580 = vmatpush2.bf16.xpose.msra.mxu0 0
        %1581 = vmatprep.subr.bf16.mxu0 0
        %1582 = vmatpush2.bf16.xpose.msra.mxu0 0
        %1583 = vmatprep.subr.bf16.mxu0 0
        %1584 = vmatpush2.bf16.xpose.msra.mxu0 0
        %1585 = vmatprep.subr.bf16.mxu0 0
        %1586 = vmatpush2.bf16.xpose.msra.mxu0 0
        %1587 = vmatprep.mubr.bf16.mxu0 0
        %1588 = vmatmul.mubr.bf16.gmra.mxu0 %v1550
        %v1589 = vpop.f32.mrf.mxu0
        %v1590 = vadd.f32 0.0, %v1589
        %v1591 = vpop.f32.mrf.mxu0
        %v1592 = vpop.f32.mrf.mxu0
        %v1593 = vpop.f32.mrf.mxu0
        %1594 = vdwg.mxu0
        %v1596 = vsel %vm1502, %v1200, 0
        %v1599 = vsel %vm1502, %v1350, 0
        %1601 = vmatprep.subr.bf16.mxu0 0
        %1602 = vmatpush1.bf16.xpose.msra.mxu0 0
        %1603 = vmatprep.subr.bf16.mxu0 0
        %1604 = vmatpush1.bf16.xpose.msra.mxu0 0
        %1605 = vmatprep.subr.bf16.mxu0 0
        %1606 = vmatpush1.bf16.xpose.msra.mxu0 0
        %1607 = vmatprep.subr.bf16.mxu0 0
        %1608 = vmatpush1.bf16.xpose.msra.mxu0 0
        %1609 = vmatprep.subr.bf16.mxu0 0
        %1610 = vmatpush1.bf16.xpose.msra.mxu0 0
        %1611 = vmatprep.subr.bf16.mxu0 0
        %1612 = vmatpush1.bf16.xpose.msra.mxu0 0
        %1613 = vmatprep.subr.bf16.mxu0 0
        %1614 = vmatpush1.bf16.xpose.msra.mxu0 0
        %1615 = vmatprep.subr.bf16.mxu0 0
        %1616 = vmatpush1.bf16.xpose.msra.mxu0 %v1599
        %1617 = vmatprep.subr.bf16.mxu0 0
        %1618 = vmatpush2.bf16.xpose.msra.mxu0 0
        %1619 = vmatprep.subr.bf16.mxu0 0
        %1620 = vmatpush2.bf16.xpose.msra.mxu0 0
        %1621 = vmatprep.subr.bf16.mxu0 0
        %1622 = vmatpush2.bf16.xpose.msra.mxu0 0
        %1623 = vmatprep.subr.bf16.mxu0 0
        %1624 = vmatpush2.bf16.xpose.msra.mxu0 0
        %1625 = vmatprep.subr.bf16.mxu0 0
        %1626 = vmatpush2.bf16.xpose.msra.mxu0 0
        %1627 = vmatprep.subr.bf16.mxu0 0
        %1628 = vmatpush2.bf16.xpose.msra.mxu0 0
        %1629 = vmatprep.subr.bf16.mxu0 0
        %1630 = vmatpush2.bf16.xpose.msra.mxu0 0
        %1631 = vmatprep.subr.bf16.mxu0 0
        %1632 = vmatpush2.bf16.xpose.msra.mxu0 0
        %1633 = vmatprep.mubr.bf16.mxu0 0
        %1634 = vmatmul.mubr.bf16.gmra.mxu0 %v1596
        %v1635 = vpop.f32.mrf.mxu0
        %v1636 = vadd.f32 0.0, %v1635
        %v1637 = vpop.f32.mrf.mxu0
        %v1638 = vpop.f32.mrf.mxu0
        %v1639 = vpop.f32.mrf.mxu0
        %1640 = vdwg.mxu0
        %v1642 = vsel %vm1502, %v1201, 0
        %v1645 = vsel %vm1502, %v1351, 0
        %1647 = vmatprep.subr.bf16.mxu0 0
        %1648 = vmatpush1.bf16.xpose.msra.mxu0 0
        %1649 = vmatprep.subr.bf16.mxu0 0
        %1650 = vmatpush1.bf16.xpose.msra.mxu0 0
        %1651 = vmatprep.subr.bf16.mxu0 0
        %1652 = vmatpush1.bf16.xpose.msra.mxu0 0
        %1653 = vmatprep.subr.bf16.mxu0 0
        %1654 = vmatpush1.bf16.xpose.msra.mxu0 0
        %1655 = vmatprep.subr.bf16.mxu0 0
        %1656 = vmatpush1.bf16.xpose.msra.mxu0 0
        %1657 = vmatprep.subr.bf16.mxu0 0
        %1658 = vmatpush1.bf16.xpose.msra.mxu0 0
        %1659 = vmatprep.subr.bf16.mxu0 0
        %1660 = vmatpush1.bf16.xpose.msra.mxu0 0
        %1661 = vmatprep.subr.bf16.mxu0 0
        %1662 = vmatpush1.bf16.xpose.msra.mxu0 %v1645
        %1663 = vmatprep.subr.bf16.mxu0 0
        %1664 = vmatpush2.bf16.xpose.msra.mxu0 0
        %1665 = vmatprep.subr.bf16.mxu0 0
        %1666 = vmatpush2.bf16.xpose.msra.mxu0 0
        %1667 = vmatprep.subr.bf16.mxu0 0
        %1668 = vmatpush2.bf16.xpose.msra.mxu0 0
        %1669 = vmatprep.subr.bf16.mxu0 0
        %1670 = vmatpush2.bf16.xpose.msra.mxu0 0
        %1671 = vmatprep.subr.bf16.mxu0 0
        %1672 = vmatpush2.bf16.xpose.msra.mxu0 0
        %1673 = vmatprep.subr.bf16.mxu0 0
        %1674 = vmatpush2.bf16.xpose.msra.mxu0 0
        %1675 = vmatprep.subr.bf16.mxu0 0
        %1676 = vmatpush2.bf16.xpose.msra.mxu0 0
        %1677 = vmatprep.subr.bf16.mxu0 0
        %1678 = vmatpush2.bf16.xpose.msra.mxu0 0
        %1679 = vmatprep.mubr.bf16.mxu0 0
        %1680 = vmatmul.mubr.bf16.gmra.mxu0 %v1642
        %v1681 = vpop.f32.mrf.mxu0
        %v1682 = vadd.f32 0.0, %v1681
        %v1683 = vpop.f32.mrf.mxu0
        %v1684 = vpop.f32.mrf.mxu0
        %v1685 = vpop.f32.mrf.mxu0
        %1686 = vdwg.mxu0
        %v1687 = vmul.f32 %v1544, 0.25
        %v1688 = vmul.f32 %v1590, 0.25
        %v1689 = vmul.f32 %v1636, 0.25
        %v1690 = vmul.f32 %v1682, 0.25
        %v1691 = vld [vmem:[#allocation4] sm:$0xff]
        %v1692 = vadd.f32 %v1687, %v1691
        %v1693 = vadd.f32 %v1688, %v1691
        %v1694 = vadd.f32 %v1689, %v1691
        %v1695 = vadd.f32 %v1690, %v1691
        %vm1696 = vcmask 64512
        %v1697 = vsel %vm1696, %v1692, -inf
        %1698 = vmax.xlane.f32.xlu0 %v1697
        %v1699 = vpop.xlane.xlu0 %1698
        %v1700 = vsel %vm1696, %v1693, -inf
        %1701 = vmax.xlane.f32.xlu0 %v1700
        %v1702 = vpop.xlane.xlu0 %1701
        %v1703 = vsel %vm1696, %v1694, -inf
        %1704 = vmax.xlane.f32.xlu0 %v1703
        %v1705 = vpop.xlane.xlu0 %1704
        %v1706 = vsel %vm1696, %v1695, -inf
        %1707 = vmax.xlane.f32.xlu0 %v1706
        %v1708 = vpop.xlane.xlu0 %1707
        %v1709 = vsub.f32 %v1692, %v1699
        %v1710 = vsub.f32 %v1693, %v1702
        %v1711 = vsub.f32 %v1694, %v1705
        %v1712 = vsub.f32 %v1695, %v1708
        %v1713 = vmul.f32 %v1709, 1.442695
        %v1714 = vpow.pop %v1713
        %v1715 = vmul.f32 %v1710, 1.442695
        %v1716 = vpow.pop %v1715
        %v1717 = vmul.f32 %v1711, 1.442695
        %v1718 = vpow.pop %v1717
        %v1719 = vmul.f32 %v1712, 1.442695
        %v1720 = vpow.pop %v1719
        %v1721 = vsel %vm1696, %v1714, 0.0
        %1722 = vadd.xlane.f32.xlu0 %v1721
        %v1723 = vpop.xlane.xlu0 %1722
        %v1724 = vsel %vm1696, %v1716, 0.0
        %1725 = vadd.xlane.f32.xlu0 %v1724
        %v1726 = vpop.xlane.xlu0 %1725
        %v1727 = vsel %vm1696, %v1718, 0.0
        %1728 = vadd.xlane.f32.xlu0 %v1727
        %v1729 = vpop.xlane.xlu0 %1728
        %v1730 = vsel %vm1696, %v1720, 0.0
        %1731 = vadd.xlane.f32.xlu0 %v1730
        %v1732 = vpop.xlane.xlu0 %1731
        %v1733 = vrcp.pop %v1723
        %v1734 = vmul.f32 %v1714, %v1733
        %v1735 = vrcp.pop %v1726
        %v1736 = vmul.f32 %v1716, %v1735
        %v1737 = vrcp.pop %v1729
        %v1738 = vmul.f32 %v1718, %v1737
        %v1739 = vrcp.pop %v1732
        %v1740 = vmul.f32 %v1720, %v1739
        %v1741 = vpack.c.bf16 %v1734, %v1734
        %v1742 = vpack.c.bf16 %v1736, %v1736
        %v1743 = vpack.c.bf16 %v1738, %v1738
        %v1744 = vpack.c.bf16 %v1740, %v1740
        %v1746 = vsel %vm1696, %v1741, 0
        %vm1748 = vcmask 1043456
        %v1750 = vsel %vm1748, %v1498, 0
        %1752 = vmatprep.subr.bf16.mxu0 0
        %1753 = vmatpush1.bf16.msra.mxu0 0
        %1754 = vmatprep.subr.bf16.mxu0 0
        %1755 = vmatpush1.bf16.msra.mxu0 0
        %1756 = vmatprep.subr.bf16.mxu0 0
        %1757 = vmatpush1.bf16.msra.mxu0 0
        %1758 = vmatprep.subr.bf16.mxu0 0
        %1759 = vmatpush1.bf16.msra.mxu0 0
        %1760 = vmatprep.subr.bf16.mxu0 0
        %1761 = vmatpush1.bf16.msra.mxu0 0
        %1762 = vmatprep.subr.bf16.mxu0 0
        %1763 = vmatpush1.bf16.msra.mxu0 0
        %1764 = vmatprep.subr.bf16.mxu0 0
        %1765 = vmatpush1.bf16.msra.mxu0 0
        %1766 = vmatprep.subr.bf16.mxu0 0
        %1767 = vmatpush1.bf16.msra.mxu0 %v1750
        %1768 = vmatprep.subr.bf16.mxu0 0
        %1769 = vmatpush2.bf16.msra.mxu0 0
        %1770 = vmatprep.subr.bf16.mxu0 0
        %1771 = vmatpush2.bf16.msra.mxu0 0
        %1772 = vmatprep.subr.bf16.mxu0 0
        %1773 = vmatpush2.bf16.msra.mxu0 0
        %1774 = vmatprep.subr.bf16.mxu0 0
        %1775 = vmatpush2.bf16.msra.mxu0 0
        %1776 = vmatprep.subr.bf16.mxu0 0
        %1777 = vmatpush2.bf16.msra.mxu0 0
        %1778 = vmatprep.subr.bf16.mxu0 0
        %1779 = vmatpush2.bf16.msra.mxu0 0
        %1780 = vmatprep.subr.bf16.mxu0 0
        %1781 = vmatpush2.bf16.msra.mxu0 0
        %1782 = vmatprep.subr.bf16.mxu0 0
        %1783 = vmatpush2.bf16.msra.mxu0 0
        %1784 = vmatprep.mubr.bf16.mxu0 0
        %1785 = vmatmul.mubr.bf16.gmra.mxu0 %v1746
        %v1786 = vpop.f32.mrf.mxu0
        %v1787 = vadd.f32 0.0, %v1786
        %v1788 = vpop.f32.mrf.mxu0
        %v1789 = vpop.f32.mrf.mxu0
        %v1790 = vpop.f32.mrf.mxu0
        %1791 = vdwg.mxu0
        %v1793 = vsel %vm1696, %v1742, 0
        %v1796 = vsel %vm1748, %v1499, 0
        %1798 = vmatprep.subr.bf16.mxu0 0
        %1799 = vmatpush1.bf16.msra.mxu0 0
        %1800 = vmatprep.subr.bf16.mxu0 0
        %1801 = vmatpush1.bf16.msra.mxu0 0
        %1802 = vmatprep.subr.bf16.mxu0 0
        %1803 = vmatpush1.bf16.msra.mxu0 0
        %1804 = vmatprep.subr.bf16.mxu0 0
        %1805 = vmatpush1.bf16.msra.mxu0 0
        %1806 = vmatprep.subr.bf16.mxu0 0
        %1807 = vmatpush1.bf16.msra.mxu0 0
        %1808 = vmatprep.subr.bf16.mxu0 0
        %1809 = vmatpush1.bf16.msra.mxu0 0
        %1810 = vmatprep.subr.bf16.mxu0 0
        %1811 = vmatpush1.bf16.msra.mxu0 0
        %1812 = vmatprep.subr.bf16.mxu0 0
        %1813 = vmatpush1.bf16.msra.mxu0 %v1796
        %1814 = vmatprep.subr.bf16.mxu0 0
        %1815 = vmatpush2.bf16.msra.mxu0 0
        %1816 = vmatprep.subr.bf16.mxu0 0
        %1817 = vmatpush2.bf16.msra.mxu0 0
        %1818 = vmatprep.subr.bf16.mxu0 0
        %1819 = vmatpush2.bf16.msra.mxu0 0
        %1820 = vmatprep.subr.bf16.mxu0 0
        %1821 = vmatpush2.bf16.msra.mxu0 0
        %1822 = vmatprep.subr.bf16.mxu0 0
        %1823 = vmatpush2.bf16.msra.mxu0 0
        %1824 = vmatprep.subr.bf16.mxu0 0
        %1825 = vmatpush2.bf16.msra.mxu0 0
        %1826 = vmatprep.subr.bf16.mxu0 0
        %1827 = vmatpush2.bf16.msra.mxu0 0
        %1828 = vmatprep.subr.bf16.mxu0 0
        %1829 = vmatpush2.bf16.msra.mxu0 0
        %1830 = vmatprep.mubr.bf16.mxu0 0
        %1831 = vmatmul.mubr.bf16.gmra.mxu0 %v1793
        %v1832 = vpop.f32.mrf.mxu0
        %v1833 = vadd.f32 0.0, %v1832
        %v1834 = vpop.f32.mrf.mxu0
        %v1835 = vpop.f32.mrf.mxu0
        %v1836 = vpop.f32.mrf.mxu0
        %1837 = vdwg.mxu0
        %v1839 = vsel %vm1696, %v1743, 0
        %v1842 = vsel %vm1748, %v1500, 0
        %1844 = vmatprep.subr.bf16.mxu0 0
        %1845 = vmatpush1.bf16.msra.mxu0 0
        %1846 = vmatprep.subr.bf16.mxu0 0
        %1847 = vmatpush1.bf16.msra.mxu0 0
        %1848 = vmatprep.subr.bf16.mxu0 0
        %1849 = vmatpush1.bf16.msra.mxu0 0
        %1850 = vmatprep.subr.bf16.mxu0 0
        %1851 = vmatpush1.bf16.msra.mxu0 0
        %1852 = vmatprep.subr.bf16.mxu0 0
        %1853 = vmatpush1.bf16.msra.mxu0 0
        %1854 = vmatprep.subr.bf16.mxu0 0
        %1855 = vmatpush1.bf16.msra.mxu0 0
        %1856 = vmatprep.subr.bf16.mxu0 0
        %1857 = vmatpush1.bf16.msra.mxu0 0
        %1858 = vmatprep.subr.bf16.mxu0 0
        %1859 = vmatpush1.bf16.msra.mxu0 %v1842
        %1860 = vmatprep.subr.bf16.mxu0 0
        %1861 = vmatpush2.bf16.msra.mxu0 0
        %1862 = vmatprep.subr.bf16.mxu0 0
        %1863 = vmatpush2.bf16.msra.mxu0 0
        %1864 = vmatprep.subr.bf16.mxu0 0
        %1865 = vmatpush2.bf16.msra.mxu0 0
        %1866 = vmatprep.subr.bf16.mxu0 0
        %1867 = vmatpush2.bf16.msra.mxu0 0
        %1868 = vmatprep.subr.bf16.mxu0 0
        %1869 = vmatpush2.bf16.msra.mxu0 0
        %1870 = vmatprep.subr.bf16.mxu0 0
        %1871 = vmatpush2.bf16.msra.mxu0 0
        %1872 = vmatprep.subr.bf16.mxu0 0
        %1873 = vmatpush2.bf16.msra.mxu0 0
        %1874 = vmatprep.subr.bf16.mxu0 0
        %1875 = vmatpush2.bf16.msra.mxu0 0
        %1876 = vmatprep.mubr.bf16.mxu0 0
        %1877 = vmatmul.mubr.bf16.gmra.mxu0 %v1839
        %v1878 = vpop.f32.mrf.mxu0
        %v1879 = vadd.f32 0.0, %v1878
        %v1880 = vpop.f32.mrf.mxu0
        %v1881 = vpop.f32.mrf.mxu0
        %v1882 = vpop.f32.mrf.mxu0
        %1883 = vdwg.mxu0
        %v1885 = vsel %vm1696, %v1744, 0
        %v1888 = vsel %vm1748, %v1501, 0
        %1890 = vmatprep.subr.bf16.mxu0 0
        %1891 = vmatpush1.bf16.msra.mxu0 0
        %1892 = vmatprep.subr.bf16.mxu0 0
        %1893 = vmatpush1.bf16.msra.mxu0 0
        %1894 = vmatprep.subr.bf16.mxu0 0
        %1895 = vmatpush1.bf16.msra.mxu0 0
        %1896 = vmatprep.subr.bf16.mxu0 0
        %1897 = vmatpush1.bf16.msra.mxu0 0
        %1898 = vmatprep.subr.bf16.mxu0 0
        %1899 = vmatpush1.bf16.msra.mxu0 0
        %1900 = vmatprep.subr.bf16.mxu0 0
        %1901 = vmatpush1.bf16.msra.mxu0 0
        %1902 = vmatprep.subr.bf16.mxu0 0
        %1903 = vmatpush1.bf16.msra.mxu0 0
        %1904 = vmatprep.subr.bf16.mxu0 0
        %1905 = vmatpush1.bf16.msra.mxu0 %v1888
        %1906 = vmatprep.subr.bf16.mxu0 0
        %1907 = vmatpush2.bf16.msra.mxu0 0
        %1908 = vmatprep.subr.bf16.mxu0 0
        %1909 = vmatpush2.bf16.msra.mxu0 0
        %1910 = vmatprep.subr.bf16.mxu0 0
        %1911 = vmatpush2.bf16.msra.mxu0 0
        %1912 = vmatprep.subr.bf16.mxu0 0
        %1913 = vmatpush2.bf16.msra.mxu0 0
        %1914 = vmatprep.subr.bf16.mxu0 0
        %1915 = vmatpush2.bf16.msra.mxu0 0
        %1916 = vmatprep.subr.bf16.mxu0 0
        %1917 = vmatpush2.bf16.msra.mxu0 0
        %1918 = vmatprep.subr.bf16.mxu0 0
        %1919 = vmatpush2.bf16.msra.mxu0 0
        %1920 = vmatprep.subr.bf16.mxu0 0
        %1921 = vmatpush2.bf16.msra.mxu0 0
        %1922 = vmatprep.mubr.bf16.mxu0 0
        %1923 = vmatmul.mubr.bf16.gmra.mxu0 %v1885
        %v1924 = vpop.f32.mrf.mxu0
        %v1925 = vadd.f32 0.0, %v1924
        %v1926 = vpop.f32.mrf.mxu0
        %v1927 = vpop.f32.mrf.mxu0
        %v1928 = vpop.f32.mrf.mxu0
        %1929 = vdwg.mxu0
        %v1930 = vcombine.low %v1787, %v1879
        %v1931 = vcombine.high %v1787, %v1879
        %v1933 = vunpack.c.l.s4 1983009808
        %v1934 = vunpack.c.0.s8 %v1933
        %v1935 = vlaneseq
        %v1936 = vshrl.u32 %v1935, 7
        %v1937 = vsub.s32 %v1934, %v1936
        %v1938 = vrot.slane %v1930, %v1937
        %v1940 = vunpack.c.l.s4 1983009808
        %v1941 = vunpack.c.0.s8 %v1940
        %v1942 = vlaneseq
        %v1943 = vshrl.u32 %v1942, 7
        %v1944 = vsub.s32 %v1941, %v1943
        %v1945 = vrot.slane %v1931, %v1944
        %v1946 = vcombine.low %v1833, %v1925
        %v1947 = vcombine.high %v1833, %v1925
        %v1949 = vunpack.c.l.s4 1983009808
        %v1950 = vunpack.c.0.s8 %v1949
        %v1951 = vlaneseq
        %v1952 = vshrl.u32 %v1951, 7
        %v1953 = vsub.s32 %v1950, %v1952
        %v1954 = vrot.slane %v1946, %v1953
        %v1956 = vunpack.c.l.s4 1983009808
        %v1957 = vunpack.c.0.s8 %v1956
        %v1958 = vlaneseq
        %v1959 = vshrl.u32 %v1958, 7
        %v1960 = vsub.s32 %v1957, %v1959
        %v1961 = vrot.slane %v1947, %v1960
        %v1962 = vcombine.low %v1938, %v1954
        %v1963 = vcombine.high %v1938, %v1954
        %v1965 = vunpack.c.l.s4 1934713408
        %v1966 = vunpack.c.0.s8 %v1965
        %v1967 = vlaneseq
        %v1968 = vshrl.u32 %v1967, 7
        %v1969 = vsub.s32 %v1966, %v1968
        %v1970 = vrot.slane %v1962, %v1969
        %v1972 = vunpack.c.l.s4 1934713408
        %v1973 = vunpack.c.0.s8 %v1972
        %v1974 = vlaneseq
        %v1975 = vshrl.u32 %v1974, 7
        %v1976 = vsub.s32 %v1973, %v1975
        %v1977 = vrot.slane %v1963, %v1976
        %v1978 = vcombine.low %v1945, %v1961
        %v1979 = vcombine.high %v1945, %v1961
        %v1981 = vunpack.c.l.s4 1934713408
        %v1982 = vunpack.c.0.s8 %v1981
        %v1983 = vlaneseq
        %v1984 = vshrl.u32 %v1983, 7
        %v1985 = vsub.s32 %v1982, %v1984
        %v1986 = vrot.slane %v1978, %v1985
        %v1988 = vunpack.c.l.s4 1934713408
        %v1989 = vunpack.c.0.s8 %v1988
        %v1990 = vlaneseq
        %v1991 = vshrl.u32 %v1990, 7
        %v1992 = vsub.s32 %v1989, %v1991
        %v1993 = vrot.slane %v1979, %v1992
        %v1994 = vcombine.high %v1970, 0.0
        %v1995 = vcombine.high %v1977, 0.0
        %v1996 = vcombine.high %v1986, 0.0
        %v1997 = vcombine.high %v1993, 0.0
        %v1998 = vcombine.low %v1970, %v1977
        %v2000 = vunpack.c.l.s4 1983009808
        %v2001 = vunpack.c.0.s8 %v2000
        %v2002 = vlaneseq
        %v2003 = vshrl.u32 %v2002, 7
        %v2004 = vsub.s32 %v2001, %v2003
        %v2005 = vrot.slane %v1998, %v2004
        %v2006 = vcombine.low %v1994, %v1995
        %v2008 = vunpack.c.l.s4 1983009808
        %v2009 = vunpack.c.0.s8 %v2008
        %v2010 = vlaneseq
        %v2011 = vshrl.u32 %v2010, 7
        %v2012 = vsub.s32 %v2009, %v2011
        %v2013 = vrot.slane %v2006, %v2012
        %v2014 = vcombine.low %v1986, %v1993
        %v2016 = vunpack.c.l.s4 1983009808
        %v2017 = vunpack.c.0.s8 %v2016
        %v2018 = vlaneseq
        %v2019 = vshrl.u32 %v2018, 7
        %v2020 = vsub.s32 %v2017, %v2019
        %v2021 = vrot.slane %v2014, %v2020
        %v2022 = vcombine.low %v1996, %v1997
        %v2024 = vunpack.c.l.s4 1983009808
        %v2025 = vunpack.c.0.s8 %v2024
        %v2026 = vlaneseq
        %v2027 = vshrl.u32 %v2026, 7
        %v2028 = vsub.s32 %v2025, %v2027
        %v2029 = vrot.slane %v2022, %v2028
        %v2030 = vcombine.low %v2005, %v2013
        %v2031 = vcombine.high %v2005, %v2013
        %v2033 = vunpack.c.l.s4 1934713408
        %v2034 = vunpack.c.0.s8 %v2033
        %v2035 = vlaneseq
        %v2036 = vshrl.u32 %v2035, 7
        %v2037 = vsub.s32 %v2034, %v2036
        %v2038 = vrot.slane %v2030, %v2037
        %v2040 = vunpack.c.l.s4 1934713408
        %v2041 = vunpack.c.0.s8 %v2040
        %v2042 = vlaneseq
        %v2043 = vshrl.u32 %v2042, 7
        %v2044 = vsub.s32 %v2041, %v2043
        %v2045 = vrot.slane %v2031, %v2044
        %v2046 = vcombine.low %v2021, %v2029
        %v2047 = vcombine.high %v2021, %v2029
        %v2049 = vunpack.c.l.s4 1934713408
        %v2050 = vunpack.c.0.s8 %v2049
        %v2051 = vlaneseq
        %v2052 = vshrl.u32 %v2051, 7
        %v2053 = vsub.s32 %v2050, %v2052
        %v2054 = vrot.slane %v2046, %v2053
        %v2056 = vunpack.c.l.s4 1934713408
        %v2057 = vunpack.c.0.s8 %v2056
        %v2058 = vlaneseq
        %v2059 = vshrl.u32 %v2058, 7
        %v2060 = vsub.s32 %v2057, %v2059
        %v2061 = vrot.slane %v2047, %v2060
        %v2062 = vcombine.low %v2038, %v2054
        %v2063 = vcombine.high %v2038, %v2054
        %v2064 = vcombine.low %v2045, %v2061
        %v2065 = vcombine.high %v2045, %v2061
        %2067 = vrot.lane.b32.xlu0 %v2063, 32
        %v2068 = vpop.permute.xlu0 %2067
        %2071 = vrot.lane.b32.xlu0 %v2064, 64
        %v2072 = vpop.permute.xlu0 %2071
        %2075 = vrot.lane.b32.xlu0 %v2065, 96
        %v2076 = vpop.permute.xlu0 %2075
        %v2078 = vsel %vm1502, %v2062, %v2068
        %vm2079 = vcmask 523264
        %v2080 = vsel %vm2079, %v2078, %v2072
        %vm2081 = vcmask 785408
        %v2082 = vsel %vm2081, %v2080, %v2076
        %v2083 = vpack.c.bf16 %v2082, %v2082
        %v2084 = vld [vmem:[%s625] sm:$0xf]
        %v2085 = vld [vmem:[%s625 + $0x4] sm:$0xf]
        %v2086 = vld [vmem:[%s625 + $0x8] sm:$0xf]
        %v2087 = vld [vmem:[%s625 + $0xc] sm:$0xf]
        %v2088 = vld [vmem:[%s625 + $0x10] sm:$0xf]
        %v2089 = vld [vmem:[%s625 + $0x14] sm:$0xf]
        %v2090 = vld [vmem:[%s625 + $0x18] sm:$0xf]
        %v2091 = vld [vmem:[%s625 + $0x1c] sm:$0xf]
        %v2092 = vld [vmem:[%s625 + $0x20] sm:$0xf]
        %v2093 = vld [vmem:[%s625 + $0x24] sm:$0xf]
        %v2094 = vld [vmem:[%s625 + $0x28] sm:$0xf]
        %v2095 = vld [vmem:[%s625 + $0x2c] sm:$0xf]
        %v2096 = vld [vmem:[%s625 + $0x30] sm:$0xf]
        %v2097 = vld [vmem:[%s625 + $0x34] sm:$0xf]
        %v2098 = vld [vmem:[%s625 + $0x38] sm:$0xf]
        %v2099 = vld [vmem:[%s625 + $0x3c] sm:$0xf]
        %v2100 = vld [vmem:[%s733] sm:$0x1]
        %v2102 = vlaneseq
        %v2103 = vshrl.u32 %v2102, 7
        %v2104 = vsub.s32 0, %v2103
        %v2105 = vrot.slane %v2100, %v2104
        %v2123 = vunpack.c.l.b16 %v2084
        %v2124 = vunpack.c.l.b16 %v2085
        %v2125 = vunpack.c.l.b16 %v2086
        %v2126 = vunpack.c.l.b16 %v2087
        %v2127 = vunpack.c.l.b16 %v2088
        %v2128 = vunpack.c.l.b16 %v2089
        %v2129 = vunpack.c.l.b16 %v2090
        %v2130 = vunpack.c.l.b16 %v2091
        %v2131 = vunpack.c.l.b16 %v2092
        %v2132 = vunpack.c.l.b16 %v2093
        %v2133 = vunpack.c.l.b16 %v2094
        %v2134 = vunpack.c.l.b16 %v2095
        %v2135 = vunpack.c.l.b16 %v2096
        %v2136 = vunpack.c.l.b16 %v2097
        %v2137 = vunpack.c.l.b16 %v2098
        %v2138 = vunpack.c.l.b16 %v2099
        %v2139 = vpack.c.b16 %v2124, %v2123
        %v2140 = vpack.c.b16 %v2126, %v2125
        %v2141 = vpack.c.b16 %v2128, %v2127
        %v2142 = vpack.c.b16 %v2130, %v2129
        %v2143 = vpack.c.b16 %v2132, %v2131
        %v2144 = vpack.c.b16 %v2134, %v2133
        %v2145 = vpack.c.b16 %v2136, %v2135
        %v2146 = vpack.c.b16 %v2138, %v2137
        %2155 = vmatprep.subr.bf16.mxu0 0
        %2156 = vmatpush1.bf16.msra.mxu0 %v2146
        %2157 = vmatprep.subr.bf16.mxu0 0
        %2158 = vmatpush1.bf16.msra.mxu0 %v2145
        %2159 = vmatprep.subr.bf16.mxu0 0
        %2160 = vmatpush1.bf16.msra.mxu0 %v2144
        %2161 = vmatprep.subr.bf16.mxu0 0
        %2162 = vmatpush1.bf16.msra.mxu0 %v2143
        %2163 = vmatprep.subr.bf16.mxu0 0
        %2164 = vmatpush1.bf16.msra.mxu0 %v2142
        %2165 = vmatprep.subr.bf16.mxu0 0
        %2166 = vmatpush1.bf16.msra.mxu0 %v2141
        %2167 = vmatprep.subr.bf16.mxu0 0
        %2168 = vmatpush1.bf16.msra.mxu0 %v2140
        %2169 = vmatprep.subr.bf16.mxu0 0
        %2170 = vmatpush1.bf16.msra.mxu0 %v2139
        %2171 = vmatprep.subr.bf16.mxu0 0
        %2172 = vmatpush2.bf16.msra.mxu0 0
        %2173 = vmatprep.subr.bf16.mxu0 0
        %2174 = vmatpush2.bf16.msra.mxu0 0
        %2175 = vmatprep.subr.bf16.mxu0 0
        %2176 = vmatpush2.bf16.msra.mxu0 0
        %2177 = vmatprep.subr.bf16.mxu0 0
        %2178 = vmatpush2.bf16.msra.mxu0 0
        %2179 = vmatprep.subr.bf16.mxu0 0
        %2180 = vmatpush2.bf16.msra.mxu0 0
        %2181 = vmatprep.subr.bf16.mxu0 0
        %2182 = vmatpush2.bf16.msra.mxu0 0
        %2183 = vmatprep.subr.bf16.mxu0 0
        %2184 = vmatpush2.bf16.msra.mxu0 0
        %2185 = vmatprep.subr.bf16.mxu0 0
        %2186 = vmatpush2.bf16.msra.mxu0 0
        %2187 = vmatprep.mubr.bf16.mxu0 0
        %2188 = vmatmul.mubr.bf16.gmra.mxu0 %v2083
        %v2189 = vpop.f32.mrf.mxu0
        %v2190 = vadd.f32 %v2105, %v2189
        %v2191 = vpop.f32.mrf.mxu0
        %v2192 = vpop.f32.mrf.mxu0
        %v2193 = vpop.f32.mrf.mxu0
        %2194 = vdwg.mxu0
        %v2195 = vadd.f32 %v763, %v2190
        %v2196 = vpack.c.bf16 %v2195, %v2195
        %v2197 = vld [vmem:[%s634] sm:$0xff]
        %v2198 = vld [vmem:[%s634 + $0x8] sm:$0xff]
        %v2199 = vld [vmem:[%s634 + $0x10] sm:$0xff]
        %v2200 = vld [vmem:[%s634 + $0x18] sm:$0xff]
        %v2201 = vld [vmem:[%s634 + $0x20] sm:$0xff]
        %v2202 = vld [vmem:[%s634 + $0x28] sm:$0xff]
        %v2203 = vld [vmem:[%s634 + $0x30] sm:$0xff]
        %v2204 = vld [vmem:[%s634 + $0x38] sm:$0xff]
        %v2205 = vld [vmem:[%s634 + $0x40] sm:$0xff]
        %v2206 = vld [vmem:[%s634 + $0x48] sm:$0xff]
        %v2207 = vld [vmem:[%s634 + $0x50] sm:$0xff]
        %v2208 = vld [vmem:[%s634 + $0x58] sm:$0xff]
        %v2209 = vld [vmem:[%s634 + $0x60] sm:$0xff]
        %v2210 = vld [vmem:[%s634 + $0x68] sm:$0xff]
        %v2211 = vld [vmem:[%s634 + $0x70] sm:$0xff]
        %v2212 = vld [vmem:[%s634 + $0x78] sm:$0xff]
        %v2213 = vld [vmem:[%s737] sm:$0x3]
        %v2215 = vlaneseq
        %v2216 = vshrl.u32 %v2215, 7
        %v2217 = vsub.s32 0, %v2216
        %v2218 = vrot.slane %v2213, %v2217
        %v2219 = vlaneseq
        %v2220 = vshrl.u32 %v2219, 7
        %v2221 = vsub.s32 1, %v2220
        %v2222 = vrot.slane %v2213, %v2221
        %v2241 = vunpack.c.l.b16 %v2197
        %v2242 = vunpack.c.h.b16 %v2197
        %v2243 = vunpack.c.l.b16 %v2198
        %v2244 = vunpack.c.h.b16 %v2198
        %v2245 = vunpack.c.l.b16 %v2199
        %v2246 = vunpack.c.h.b16 %v2199
        %v2247 = vunpack.c.l.b16 %v2200
        %v2248 = vunpack.c.h.b16 %v2200
        %v2249 = vunpack.c.l.b16 %v2201
        %v2250 = vunpack.c.h.b16 %v2201
        %v2251 = vunpack.c.l.b16 %v2202
        %v2252 = vunpack.c.h.b16 %v2202
        %v2253 = vunpack.c.l.b16 %v2203
        %v2254 = vunpack.c.h.b16 %v2203
        %v2255 = vunpack.c.l.b16 %v2204
        %v2256 = vunpack.c.h.b16 %v2204
        %v2257 = vunpack.c.l.b16 %v2205
        %v2258 = vunpack.c.h.b16 %v2205
        %v2259 = vunpack.c.l.b16 %v2206
        %v2260 = vunpack.c.h.b16 %v2206
        %v2261 = vunpack.c.l.b16 %v2207
        %v2262 = vunpack.c.h.b16 %v2207
        %v2263 = vunpack.c.l.b16 %v2208
        %v2264 = vunpack.c.h.b16 %v2208
        %v2265 = vunpack.c.l.b16 %v2209
        %v2266 = vunpack.c.h.b16 %v2209
        %v2267 = vunpack.c.l.b16 %v2210
        %v2268 = vunpack.c.h.b16 %v2210
        %v2269 = vunpack.c.l.b16 %v2211
        %v2270 = vunpack.c.h.b16 %v2211
        %v2271 = vunpack.c.l.b16 %v2212
        %v2272 = vunpack.c.h.b16 %v2212
        %v2273 = vpack.c.b16 %v2243, %v2241
        %v2274 = vpack.c.b16 %v2244, %v2242
        %v2275 = vpack.c.b16 %v2247, %v2245
        %v2276 = vpack.c.b16 %v2248, %v2246
        %v2277 = vpack.c.b16 %v2251, %v2249
        %v2278 = vpack.c.b16 %v2252, %v2250
        %v2279 = vpack.c.b16 %v2255, %v2253
        %v2280 = vpack.c.b16 %v2256, %v2254
        %v2281 = vpack.c.b16 %v2259, %v2257
        %v2282 = vpack.c.b16 %v2260, %v2258
        %v2283 = vpack.c.b16 %v2263, %v2261
        %v2284 = vpack.c.b16 %v2264, %v2262
        %v2285 = vpack.c.b16 %v2267, %v2265
        %v2286 = vpack.c.b16 %v2268, %v2266
        %v2287 = vpack.c.b16 %v2271, %v2269
        %v2288 = vpack.c.b16 %v2272, %v2270
        %2305 = vmatprep.subr.bf16.mxu0 %v2288
        %2306 = vmatpush1.bf16.msra.mxu0 %v2287
        %2307 = vmatprep.subr.bf16.mxu0 %v2286
        %2308 = vmatpush1.bf16.msra.mxu0 %v2285
        %2309 = vmatprep.subr.bf16.mxu0 %v2284
        %2310 = vmatpush1.bf16.msra.mxu0 %v2283
        %2311 = vmatprep.subr.bf16.mxu0 %v2282
        %2312 = vmatpush1.bf16.msra.mxu0 %v2281
        %2313 = vmatprep.subr.bf16.mxu0 %v2280
        %2314 = vmatpush1.bf16.msra.mxu0 %v2279
        %2315 = vmatprep.subr.bf16.mxu0 %v2278
        %2316 = vmatpush1.bf16.msra.mxu0 %v2277
        %2317 = vmatprep.subr.bf16.mxu0 %v2276
        %2318 = vmatpush1.bf16.msra.mxu0 %v2275
        %2319 = vmatprep.subr.bf16.mxu0 %v2274
        %2320 = vmatpush1.bf16.msra.mxu0 %v2273
        %2321 = vmatprep.subr.bf16.mxu0 0
        %2322 = vmatpush2.bf16.msra.mxu0 0
        %2323 = vmatprep.subr.bf16.mxu0 0
        %2324 = vmatpush2.bf16.msra.mxu0 0
        %2325 = vmatprep.subr.bf16.mxu0 0
        %2326 = vmatpush2.bf16.msra.mxu0 0
        %2327 = vmatprep.subr.bf16.mxu0 0
        %2328 = vmatpush2.bf16.msra.mxu0 0
        %2329 = vmatprep.subr.bf16.mxu0 0
        %2330 = vmatpush2.bf16.msra.mxu0 0
        %2331 = vmatprep.subr.bf16.mxu0 0
        %2332 = vmatpush2.bf16.msra.mxu0 0
        %2333 = vmatprep.subr.bf16.mxu0 0
        %2334 = vmatpush2.bf16.msra.mxu0 0
        %2335 = vmatprep.subr.bf16.mxu0 0
        %2336 = vmatpush2.bf16.msra.mxu0 0
        %2337 = vmatprep.mubr.bf16.mxu0 0
        %2338 = vmatmul.mubr.bf16.gmra.mxu0 %v2196
        %v2339 = vpop.f32.mrf.mxu0
        %v2340 = vadd.f32 %v2218, %v2339
        %v2341 = vpop.f32.mrf.mxu0
        %v2342 = vadd.f32 %v2222, %v2341
        %v2343 = vpop.f32.mrf.mxu0
        %v2344 = vpop.f32.mrf.mxu0
        %2345 = vdwg.mxu0
        %v2346 = vmul.f32 %v2340, 0.5
        %v2347 = vmul.f32 %v2342, 0.5
        %v2348 = vmul.f32 %v2340, 0.70710677
        %v2349 = vmul.f32 %v2342, 0.70710677
        %v2350 = verf.f32.pop %v2348
        %v2351 = verf.f32.pop %v2349
        %v2352 = vadd.f32 %v2350, 1.0
        %v2353 = vadd.f32 %v2351, 1.0
        %v2354 = vmul.f32 %v2346, %v2352
        %v2355 = vmul.f32 %v2347, %v2353
        %v2356 = vpack.c.bf16 %v2354, %v2354
        %v2357 = vpack.c.bf16 %v2355, %v2355
        %v2358 = vld [vmem:[%s643] sm:$0xf]
        %v2359 = vld [vmem:[%s643 + $0x4] sm:$0xf]
        %v2360 = vld [vmem:[%s643 + $0x8] sm:$0xf]
        %v2361 = vld [vmem:[%s643 + $0xc] sm:$0xf]
        %v2362 = vld [vmem:[%s643 + $0x10] sm:$0xf]
        %v2363 = vld [vmem:[%s643 + $0x14] sm:$0xf]
        %v2364 = vld [vmem:[%s643 + $0x18] sm:$0xf]
        %v2365 = vld [vmem:[%s643 + $0x1c] sm:$0xf]
        %v2366 = vld [vmem:[%s643 + $0x20] sm:$0xf]
        %v2367 = vld [vmem:[%s643 + $0x24] sm:$0xf]
        %v2368 = vld [vmem:[%s643 + $0x28] sm:$0xf]
        %v2369 = vld [vmem:[%s643 + $0x2c] sm:$0xf]
        %v2370 = vld [vmem:[%s643 + $0x30] sm:$0xf]
        %v2371 = vld [vmem:[%s643 + $0x34] sm:$0xf]
        %v2372 = vld [vmem:[%s643 + $0x38] sm:$0xf]
        %v2373 = vld [vmem:[%s643 + $0x3c] sm:$0xf]
        %v2374 = vld [vmem:[%s643 + $0x40] sm:$0xf]
        %v2375 = vld [vmem:[%s643 + $0x44] sm:$0xf]
        %v2376 = vld [vmem:[%s643 + $0x48] sm:$0xf]
        %v2377 = vld [vmem:[%s643 + $0x4c] sm:$0xf]
        %v2378 = vld [vmem:[%s643 + $0x50] sm:$0xf]
        %v2379 = vld [vmem:[%s643 + $0x54] sm:$0xf]
        %v2380 = vld [vmem:[%s643 + $0x58] sm:$0xf]
        %v2381 = vld [vmem:[%s643 + $0x5c] sm:$0xf]
        %v2382 = vld [vmem:[%s643 + $0x60] sm:$0xf]
        %v2383 = vld [vmem:[%s643 + $0x64] sm:$0xf]
        %v2384 = vld [vmem:[%s643 + $0x68] sm:$0xf]
        %v2385 = vld [vmem:[%s643 + $0x6c] sm:$0xf]
        %v2386 = vld [vmem:[%s643 + $0x70] sm:$0xf]
        %v2387 = vld [vmem:[%s643 + $0x74] sm:$0xf]
        %v2388 = vld [vmem:[%s643 + $0x78] sm:$0xf]
        %v2389 = vld [vmem:[%s643 + $0x7c] sm:$0xf]
        %v2422 = vunpack.c.l.b16 %v2358
        %v2423 = vunpack.c.l.b16 %v2359
        %v2424 = vunpack.c.l.b16 %v2360
        %v2425 = vunpack.c.l.b16 %v2361
        %v2426 = vunpack.c.l.b16 %v2362
        %v2427 = vunpack.c.l.b16 %v2363
        %v2428 = vunpack.c.l.b16 %v2364
        %v2429 = vunpack.c.l.b16 %v2365
        %v2430 = vunpack.c.l.b16 %v2366
        %v2431 = vunpack.c.l.b16 %v2367
        %v2432 = vunpack.c.l.b16 %v2368
        %v2433 = vunpack.c.l.b16 %v2369
        %v2434 = vunpack.c.l.b16 %v2370
        %v2435 = vunpack.c.l.b16 %v2371
        %v2436 = vunpack.c.l.b16 %v2372
        %v2437 = vunpack.c.l.b16 %v2373
        %v2438 = vunpack.c.l.b16 %v2374
        %v2439 = vunpack.c.l.b16 %v2375
        %v2440 = vunpack.c.l.b16 %v2376
        %v2441 = vunpack.c.l.b16 %v2377
        %v2442 = vunpack.c.l.b16 %v2378
        %v2443 = vunpack.c.l.b16 %v2379
        %v2444 = vunpack.c.l.b16 %v2380
        %v2445 = vunpack.c.l.b16 %v2381
        %v2446 = vunpack.c.l.b16 %v2382
        %v2447 = vunpack.c.l.b16 %v2383
        %v2448 = vunpack.c.l.b16 %v2384
        %v2449 = vunpack.c.l.b16 %v2385
        %v2450 = vunpack.c.l.b16 %v2386
        %v2451 = vunpack.c.l.b16 %v2387
        %v2452 = vunpack.c.l.b16 %v2388
        %v2453 = vunpack.c.l.b16 %v2389
        %v2454 = vpack.c.b16 %v2423, %v2422
        %v2455 = vpack.c.b16 %v2425, %v2424
        %v2456 = vpack.c.b16 %v2427, %v2426
        %v2457 = vpack.c.b16 %v2429, %v2428
        %v2458 = vpack.c.b16 %v2431, %v2430
        %v2459 = vpack.c.b16 %v2433, %v2432
        %v2460 = vpack.c.b16 %v2435, %v2434
        %v2461 = vpack.c.b16 %v2437, %v2436
        %v2462 = vpack.c.b16 %v2439, %v2438
        %v2463 = vpack.c.b16 %v2441, %v2440
        %v2464 = vpack.c.b16 %v2443, %v2442
        %v2465 = vpack.c.b16 %v2445, %v2444
        %v2466 = vpack.c.b16 %v2447, %v2446
        %v2467 = vpack.c.b16 %v2449, %v2448
        %v2468 = vpack.c.b16 %v2451, %v2450
        %v2469 = vpack.c.b16 %v2453, %v2452
        %2486 = vmatprep.subr.bf16.mxu0 0
        %2487 = vmatpush1.bf16.msra.mxu0 %v2461
        %2488 = vmatprep.subr.bf16.mxu0 0
        %2489 = vmatpush1.bf16.msra.mxu0 %v2460
        %2490 = vmatprep.subr.bf16.mxu0 0
        %2491 = vmatpush1.bf16.msra.mxu0 %v2459
        %2492 = vmatprep.subr.bf16.mxu0 0
        %2493 = vmatpush1.bf16.msra.mxu0 %v2458
        %2494 = vmatprep.subr.bf16.mxu0 0
        %2495 = vmatpush1.bf16.msra.mxu0 %v2457
        %2496 = vmatprep.subr.bf16.mxu0 0
        %2497 = vmatpush1.bf16.msra.mxu0 %v2456
        %2498 = vmatprep.subr.bf16.mxu0 0
        %2499 = vmatpush1.bf16.msra.mxu0 %v2455
        %2500 = vmatprep.subr.bf16.mxu0 0
        %2501 = vmatpush1.bf16.msra.mxu0 %v2454
        %2502 = vmatprep.subr.bf16.mxu0 0
        %2503 = vmatpush2.bf16.msra.mxu0 %v2469
        %2504 = vmatprep.subr.bf16.mxu0 0
        %2505 = vmatpush2.bf16.msra.mxu0 %v2468
        %2506 = vmatprep.subr.bf16.mxu0 0
        %2507 = vmatpush2.bf16.msra.mxu0 %v2467
        %2508 = vmatprep.subr.bf16.mxu0 0
        %2509 = vmatpush2.bf16.msra.mxu0 %v2466
        %2510 = vmatprep.subr.bf16.mxu0 0
        %2511 = vmatpush2.bf16.msra.mxu0 %v2465
        %2512 = vmatprep.subr.bf16.mxu0 0
        %2513 = vmatpush2.bf16.msra.mxu0 %v2464
        %2514 = vmatprep.subr.bf16.mxu0 0
        %2515 = vmatpush2.bf16.msra.mxu0 %v2463
        %2516 = vmatprep.subr.bf16.mxu0 0
        %2517 = vmatpush2.bf16.msra.mxu0 %v2462
        %2518 = vmatprep.mubr.bf16.mxu0 %v2357
        %2519 = vmatmul.mubr.bf16.gmra.mxu0 %v2356
        %v2520 = vpop.f32.mrf.mxu0
        %v2521 = vadd.f32 0.0, %v2520
        %v2522 = vpop.f32.mrf.mxu0
        %v2523 = vpop.f32.mrf.mxu0
        %v2524 = vpop.f32.mrf.mxu0
        %2525 = vdwg.mxu0
        %v2526 = vadd.f32 %v2195, %v2521
        %v2527 = vld [vmem:[%s740] sm:$0x1]
        %v2529 = vlaneseq
        %v2530 = vshrl.u32 %v2529, 7
        %v2531 = vsub.s32 0, %v2530
        %v2532 = vrot.slane %v2527, %v2531
        %v2534 = vadd.f32 %v2526, %v2532
        %2535 = vst [vmem:[#allocation2] sm:$0xff] %v2534
        %p2536 = scmp.eq.s32.totalorder %s44, 1
        // Predicated region
        $region113: #{tpu_custom_call.1} parent=71 // pred_check
          %p2537 = pneg %p2536
        $region114: #{tpu_custom_call.1} parent=71 // pred_check_branch
          %2539 = sbr.rel (%p2537) target = $region116
        $region115: #{tpu_custom_call.1} parent=71 // pred_region
          %v2540 = vpack.c.bf16 %v2534, %v2534
          %v2541 = vld [vmem:[#allocation16] sm:$0xf]
          %v2542 = vld [vmem:[#allocation16 + $0x4] sm:$0xf]
          %v2543 = vld [vmem:[#allocation16 + $0x8] sm:$0xf]
          %v2544 = vld [vmem:[#allocation16 + $0xc] sm:$0xf]
          %v2545 = vld [vmem:[#allocation16 + $0x10] sm:$0xf]
          %v2546 = vld [vmem:[#allocation16 + $0x14] sm:$0xf]
          %v2547 = vld [vmem:[#allocation16 + $0x18] sm:$0xf]
          %v2548 = vld [vmem:[#allocation16 + $0x1c] sm:$0xf]
          %v2549 = vld [vmem:[#allocation16 + $0x20] sm:$0xf]
          %v2550 = vld [vmem:[#allocation16 + $0x24] sm:$0xf]
          %v2551 = vld [vmem:[#allocation16 + $0x28] sm:$0xf]
          %v2552 = vld [vmem:[#allocation16 + $0x2c] sm:$0xf]
          %v2553 = vld [vmem:[#allocation16 + $0x30] sm:$0xf]
          %v2554 = vld [vmem:[#allocation16 + $0x34] sm:$0xf]
          %v2555 = vld [vmem:[#allocation16 + $0x38] sm:$0xf]
          %v2556 = vld [vmem:[#allocation16 + $0x3c] sm:$0xf]
          %v2557 = vld [vmem:[%s13] sm:$0x1]
          %v2559 = vlaneseq
          %v2560 = vshrl.u32 %v2559, 7
          %v2561 = vsub.s32 0, %v2560
          %v2562 = vrot.slane %v2557, %v2561
          %v2580 = vunpack.c.l.b16 %v2541
          %v2581 = vunpack.c.l.b16 %v2542
          %v2582 = vunpack.c.l.b16 %v2543
          %v2583 = vunpack.c.l.b16 %v2544
          %v2584 = vunpack.c.l.b16 %v2545
          %v2585 = vunpack.c.l.b16 %v2546
          %v2586 = vunpack.c.l.b16 %v2547
          %v2587 = vunpack.c.l.b16 %v2548
          %v2588 = vunpack.c.l.b16 %v2549
          %v2589 = vunpack.c.l.b16 %v2550
          %v2590 = vunpack.c.l.b16 %v2551
          %v2591 = vunpack.c.l.b16 %v2552
          %v2592 = vunpack.c.l.b16 %v2553
          %v2593 = vunpack.c.l.b16 %v2554
          %v2594 = vunpack.c.l.b16 %v2555
          %v2595 = vunpack.c.l.b16 %v2556
          %v2596 = vpack.c.b16 %v2581, %v2580
          %v2597 = vpack.c.b16 %v2583, %v2582
          %v2598 = vpack.c.b16 %v2585, %v2584
          %v2599 = vpack.c.b16 %v2587, %v2586
          %v2600 = vpack.c.b16 %v2589, %v2588
          %v2601 = vpack.c.b16 %v2591, %v2590
          %v2602 = vpack.c.b16 %v2593, %v2592
          %v2603 = vpack.c.b16 %v2595, %v2594
          %2612 = vmatprep.subr.bf16.mxu0 0
          %2613 = vmatpush1.bf16.msra.mxu0 %v2603
          %2614 = vmatprep.subr.bf16.mxu0 0
          %2615 = vmatpush1.bf16.msra.mxu0 %v2602
          %2616 = vmatprep.subr.bf16.mxu0 0
          %2617 = vmatpush1.bf16.msra.mxu0 %v2601
          %2618 = vmatprep.subr.bf16.mxu0 0
          %2619 = vmatpush1.bf16.msra.mxu0 %v2600
          %2620 = vmatprep.subr.bf16.mxu0 0
          %2621 = vmatpush1.bf16.msra.mxu0 %v2599
          %2622 = vmatprep.subr.bf16.mxu0 0
          %2623 = vmatpush1.bf16.msra.mxu0 %v2598
          %2624 = vmatprep.subr.bf16.mxu0 0
          %2625 = vmatpush1.bf16.msra.mxu0 %v2597
          %2626 = vmatprep.subr.bf16.mxu0 0
          %2627 = vmatpush1.bf16.msra.mxu0 %v2596
          %2628 = vmatprep.subr.bf16.mxu0 0
          %2629 = vmatpush2.bf16.msra.mxu0 0
          %2630 = vmatprep.subr.bf16.mxu0 0
          %2631 = vmatpush2.bf16.msra.mxu0 0
          %2632 = vmatprep.subr.bf16.mxu0 0
          %2633 = vmatpush2.bf16.msra.mxu0 0
          %2634 = vmatprep.subr.bf16.mxu0 0
          %2635 = vmatpush2.bf16.msra.mxu0 0
          %2636 = vmatprep.subr.bf16.mxu0 0
          %2637 = vmatpush2.bf16.msra.mxu0 0
          %2638 = vmatprep.subr.bf16.mxu0 0
          %2639 = vmatpush2.bf16.msra.mxu0 0
          %2640 = vmatprep.subr.bf16.mxu0 0
          %2641 = vmatpush2.bf16.msra.mxu0 0
          %2642 = vmatprep.subr.bf16.mxu0 0
          %2643 = vmatpush2.bf16.msra.mxu0 0
          %2644 = vmatprep.mubr.bf16.mxu0 0
          %2645 = vmatmul.mubr.bf16.gmra.mxu0 %v2540
          %v2646 = vpop.f32.mrf.mxu0
          %v2647 = vadd.f32 %v2562, %v2646
          %v2648 = vpop.f32.mrf.mxu0
          %v2649 = vpop.f32.mrf.mxu0
          %v2650 = vpop.f32.mrf.mxu0
          %2651 = vdwg.mxu0
          %2652 = vmax.xlane.f32.xlu0 %v2647
          %v2653 = vpop.xlane.xlu0 %2652
          %v2654 = vsub.f32 %v2647, %v2653
          %v2655 = vmul.f32 %v2654, 1.442695
          %v2656 = vpow.pop %v2655
          %2657 = vadd.xlane.f32.xlu0 %v2656
          %v2658 = vpop.xlane.xlu0 %2657
          %v2659 = vrcp.pop %v2658
          %v2660 = vmul.f32 %v2656, %v2659
          %2661 = vst [vmem:[%s726] sm:$0xff] %v2660
        $region116: #{tpu_custom_call.1} parent=71 // pred_fallthru
          _
        %s2662 = sand.u32 %s382, 1
        %s2663 = scalar_lea.sflag [#allocation6], %s2662
        %s2664 = sand.u32 %s382, 1
        %s2665 = smul.addr %s2664, 8
        %s2666 = scalar_lea.vmem [#allocation18], %s2665
        // Predicated region
        $region117: #{tpu_custom_call.1} parent=71 // pred_check
          %p2667 = pneg %p392
        $region118: #{tpu_custom_call.1} parent=71 // pred_check_branch
          %2669 = sbr.rel (%p2667) target = $region120
        $region119: #{tpu_custom_call.1} parent=71 // pred_region
          %s2671 = ssub.s32 128, 128
          %2672 = vsyncadd %s2663, %s2671
          %s2673 = smul.addr %s43, 128
          %s2674 = scalar_lea.hbm %s14, %s2673
          %s2676 = sshll.u32 %s2666, 4
          %s2677 = int_to_ptr.vmem [resolvable:$true] %s2676
          %2679 = dma.vmem_to_hbm [thread:$0]  %s2677, 128, %s2674, %s2663
        $region120: #{tpu_custom_call.1} parent=71 // pred_fallthru
          _
      $region72: #{tpu_custom_call.1} parent=5 // pred_fallthru
        _
      %p2680 = scmp.le.s32.totalorder 2, %s34
      // Predicated region
      $region121: #{tpu_custom_call.1} parent=5 // pred_check
        %p2681 = pneg %p2680
      $region122: #{tpu_custom_call.1} parent=5 // pred_check_branch
        %2683 = sbr.rel (%p2681) target = $region124
      $region123: #{tpu_custom_call.1} parent=5 // pred_region
        %s2684 = ssub.s32 %s34, 2
        // Predicated region
        $region125: #{tpu_custom_call.1} parent=123 // pred_check
          %p2685 = pneg %p398
        $region126: #{tpu_custom_call.1} parent=123 // pred_check_branch
          %2687 = sbr.rel (%p2685) target = $region128
        $region127: #{tpu_custom_call.1} parent=123 // pred_region
          %s2688 = sand.u32 %s383, 1
          %s2689 = scalar_lea.sflag [#allocation6], %s2688
          %s2690 = sand.u32 %s383, 1
          %s2691 = smul.addr %s2690, 8
          %s2692 = scalar_lea.vmem [#allocation18], %s2691
          %2693 = dma.done %s2689, 128
        $region128: #{tpu_custom_call.1} parent=123 // pred_fallthru
          _
      $region124: #{tpu_custom_call.1} parent=5 // pred_fallthru
        _
    $region6: #{tpu_custom_call.1} parent=1 // loop_footer
      %s38 = sadd.s32 1, %s34
    $region7: #{tpu_custom_call.1} parent=1 // loop_footer_branch
      %33 = sbr.rel target = $region3
    $region8: #{tpu_custom_call.1} parent=1 // loop_exit
      _
    %2694 = vsyncpa [#allocation5], 1
    %s2695 = scalar_lea.sflag [#allocation5], 1
    %2696 = vsyncpa %s2695, 1
    %2697 = vsyncpa [#allocation8], 1
    %s2698 = scalar_lea.sflag [#allocation8], 1
    %2699 = vsyncpa %s2698, 1
    %2700 = vsyncpa [#allocation11], 1
    %s2701 = scalar_lea.sflag [#allocation11], 1
    %2702 = vsyncpa %s2701, 1
    %2703 = vsyncpa [#allocation14], 1
    %s2704 = scalar_lea.sflag [#allocation14], 1
    %2705 = vsyncpa %s2704, 1
    %2706 = vsyncpa [#allocation17], 1
    %2707 = vsyncpa [#allocation6], 1
    %s2708 = scalar_lea.sflag [#allocation6], 1
    %2709 = vsyncpa %s2708, 1
  %2710 = vsyncmov [#allocation3]
  %s2711 = vpop.sfrf %2710
  %p2712 = scmp.eq.s32.totalorder %s2711, 0
  %p2713 = pneg %p2712
  %2715 = shalt.err (%p2713)

</llo_original>
